<compile_context>
chip_gen: v6e
topology: v6e:2x2x1
jax: 0.10.0
libtpu: 0.0.40
codegen_flags: <defaults>
</compile_context>

<pallas_src>
import functools

import jax
import jax.numpy as jnp
from jax import lax
from jax.experimental import pallas as pl
from jax.experimental.pallas import tpu as pltpu


def fused_kernel(x_ref, w1_ref, g_ref, be_ref, w2_ref, b2_ref,
                 o_ref, xp_ref, vp_ref, *maybe_sem, use_dma):
    # x_ref : (N, 3, H, W)  HBM ref (use_dma=True) or VMEM ref (fallback)
    # w1_ref: (27,) SMEM (flat (1,3,3,3));  w2_ref: (9,) SMEM (flat (1,1,3,3))
    # g_ref, be_ref, b2_ref: (1,) SMEM
    # o_ref : (N, Ho, Wo) VMEM output
    # xp_ref: (N, 3, H+2, W+2) VMEM scratch (zero-padded conv1 input)
    # vp_ref: (N, Ho+2, Wo+2)  VMEM scratch (zero-padded raw conv1 accumulator)
    N, C, Hp, Wp = xp_ref.shape
    H, W = Hp - 2, Wp - 2
    Ho, Wo = H - 2, W - 2

    # ---- conv1 input padding -------------------------------------------------
    if use_dma:
        cp = pltpu.make_async_copy(x_ref, xp_ref.at[:, :, 1:H + 1, 1:W + 1],
                                   maybe_sem[0])
        cp.start()
    # zero ONLY the 1-pixel halo frame; overlaps the HBM->VMEM DMA above
    xp_ref[:, :, 0:1, :] = jnp.zeros((N, C, 1, Wp), jnp.float32)
    xp_ref[:, :, H + 1:H + 2, :] = jnp.zeros((N, C, 1, Wp), jnp.float32)
    xp_ref[:, :, 1:H + 1, 0:1] = jnp.zeros((N, C, H, 1), jnp.float32)
    xp_ref[:, :, 1:H + 1, W + 1:W + 2] = jnp.zeros((N, C, H, 1), jnp.float32)
    if use_dma:
        cp.wait()
    else:
        xp_ref[:, :, 1:H + 1, 1:W + 1] = x_ref[...]

    # ---- conv1 (k=3, pad=1, dilation=2), bias dropped: unrolled VPU MACs -----
    acc = jnp.zeros((N, Ho, Wo), jnp.float32)
    for c in range(C):
        xc = xp_ref[:, c]                       # whole channel loaded once
        for ky in range(3):
            for kx in range(3):
                w = w1_ref[c * 9 + ky * 3 + kx]
                acc = acc + xc[:, 2 * ky:2 * ky + Ho, 2 * kx:2 * kx + Wo] * w

    # ---- BatchNorm(v2 = 2*v1) folded onto acc --------------------------------
    # b1 only shifts mean(v2) so it cancels; var(v2) = 4*var(acc).
    # N axis reduced first (plain vreg adds on the VPU), then a single
    # cross-lane reduction pass finishes both moments.
    m = jnp.stack([jnp.sum(acc, axis=0), jnp.sum(acc * acc, axis=0)], axis=0)
    part = jnp.sum(m, axis=-1, keepdims=True)           # (2, Ho, 1)
    inv_n = 1.0 / float(N * Ho * Wo)
    mean = jnp.sum(part[0]) * inv_n
    var = jnp.maximum(jnp.sum(part[1]) * inv_n - mean * mean, 0.0)
    a = 2.0 * g_ref[0] * lax.rsqrt(4.0 * var + 1e-5)
    c0 = be_ref[0] - a * mean

    # ---- conv2 input padding: halo zeros + raw acc interior (pure copy) ------
    vp_ref[:, 0:1, :] = jnp.zeros((N, 1, Wo + 2), jnp.float32)
    vp_ref[:, Ho + 1:Ho + 2, :] = jnp.zeros((N, 1, Wo + 2), jnp.float32)
    vp_ref[:, 1:Ho + 1, 0:1] = jnp.zeros((N, Ho, 1), jnp.float32)
    vp_ref[:, 1:Ho + 1, Wo + 1:Wo + 2] = jnp.zeros((N, Ho, 1), jnp.float32)
    vp_ref[:, 1:Ho + 1, 1:Wo + 1] = acc         # BN affine folded into epilogue

    # ---- conv2 (k=3, pad=1) on raw acc: load once, 9 shifted MACs ------------
    vc = vp_ref[...]
    conv = jnp.zeros((N, Ho, Wo), jnp.float32)
    for ky in range(3):
        for kx in range(3):
            conv = conv + vc[:, ky:ky + Ho, kx:kx + Wo] * w2_ref[ky * 3 + kx]

    # ---- epilogue: v4 = a*conv2(pad(acc)) + c0*cov(w2) + b2 -------------------
    # cov[y,x] = sum of w2 taps whose zero-padded read lands inside the interior
    # (interior = sum(w2); only the 1-pixel output border differs).
    yi = lax.broadcasted_iota(jnp.int32, (Ho, Wo), 0)
    xi = lax.broadcasted_iota(jnp.int32, (Ho, Wo), 1)
    cov = jnp.zeros((Ho, Wo), jnp.float32)
    for ky in range(3):
        row_ok = jnp.logical_and(yi + ky >= 1, yi + ky <= Ho)
        for kx in range(3):
            ok = jnp.logical_and(row_ok,
                                 jnp.logical_and(xi + kx >= 1, xi + kx <= Wo))
            cov = cov + jnp.where(ok, w2_ref[ky * 3 + kx], 0.0)
    bias_map = c0 * cov + b2_ref[0]
    o_ref[...] = a * conv + bias_map[None, :, :]


def _build_forward(use_dma: bool):
    @jax.jit
    def fwd(x, w1, gamma, beta, w2, b2):
        N, C, H, W = x.shape
        Ho, Wo = H - 2, W - 2
        vmem = pl.BlockSpec(memory_space=pltpu.MemorySpace.VMEM)
        smem = pl.BlockSpec(memory_space=pltpu.MemorySpace.SMEM)
        x_spec = pl.BlockSpec(memory_space=pl.ANY) if use_dma else vmem
        scratch = [
            pltpu.VMEM((N, C, H + 2, W + 2), jnp.float32),
            pltpu.VMEM((N, Ho + 2, Wo + 2), jnp.float32),
        ]
        if use_dma:
            scratch.append(pltpu.SemaphoreType.DMA(()))
        v4 = pl.pallas_call(
            functools.partial(fused_kernel, use_dma=use_dma),
            out_shape=jax.ShapeDtypeStruct((N, Ho, Wo), jnp.float32),
            in_specs=[x_spec, smem, smem, smem, smem, smem],
            out_specs=vmem,
            scratch_shapes=scratch,
        )(x, w1.reshape(-1), gamma, beta, w2.reshape(-1), b2)
        return v4[:, None, :, :]
    return fwd


_FWD_DMA = _build_forward(True)
_FWD_COPY = _build_forward(False)
_IMPL_CACHE = {}


def model_forward(x, w1, b1, gamma, beta, w2, b2):
    # NOTE: b1 is accepted for interface parity but is mathematically eliminated
    # by the batch-statistics BatchNorm (track_running_stats=False).  It would
    # be required again if eval-mode running statistics were ever used.
    del b1
    fwd = _IMPL_CACHE.get("fwd")
    if fwd is None:
        try:
            out = _FWD_DMA(x, w1, gamma, beta, w2, b2)
            jax.block_until_ready(out)
            _IMPL_CACHE["fwd"] = _FWD_DMA
            return out
        except Exception:
            # Interior-window DMA not supported by this toolchain: fall back to
            # the in-kernel VMEM copy of x (identical math, one extra vld+vst).
            fwd = _FWD_COPY
            _IMPL_CACHE["fwd"] = fwd
    return fwd(x, w1, gamma, beta, w2, b2)


def reference_forward(x, w1, b1, gamma, beta, w2, b2):
    dn = lax.conv_dimension_numbers(x.shape, w1.shape, ("NCHW", "OIHW", "NCHW"))
    v1 = lax.conv_general_dilated(
        x, w1, window_strides=(1, 1), padding=((1, 1), (1, 1)),
        rhs_dilation=(2, 2), dimension_numbers=dn) + b1.reshape(1, -1, 1, 1)
    v2 = v1 + v1
    mean = jnp.mean(v2, axis=(0, 2, 3), keepdims=True)
    var = jnp.mean((v2 - mean) ** 2, axis=(0, 2, 3), keepdims=True)
    v3 = (v2 - mean) * lax.rsqrt(var + 1e-5) * gamma.reshape(1, -1, 1, 1) \
        + beta.reshape(1, -1, 1, 1)
    dn2 = lax.conv_dimension_numbers(v3.shape, w2.shape, ("NCHW", "OIHW", "NCHW"))
    v4 = lax.conv_general_dilated(
        v3, w2, window_strides=(1, 1), padding=((1, 1), (1, 1)),
        dimension_numbers=dn2) + b2.reshape(1, -1, 1, 1)
    return v4


if __name__ == "__main__":
    key = jax.random.PRNGKey(0)
    k_x, k_w1, k_b1, k_g, k_be, k_w2, k_b2 = jax.random.split(key, 7)

    # small shapes consistent with the module's (N, 3, H, W) input
    x = jax.random.normal(k_x, (2, 3, 16, 16), dtype=jnp.float32)
    w1 = jax.random.normal(k_w1, (1, 3, 3, 3), dtype=jnp.float32) * 0.1
    b1 = jax.random.normal(k_b1, (1,), dtype=jnp.float32) * 0.1
    gamma = 1.0 + 0.1 * jax.random.normal(k_g, (1,), dtype=jnp.float32)
    beta = 0.1 * jax.random.normal(k_be, (1,), dtype=jnp.float32)
    w2 = jax.random.normal(k_w2, (1, 1, 3, 3), dtype=jnp.float32) * 0.1
    b2 = jax.random.normal(k_b2, (1,), dtype=jnp.float32) * 0.1

    out = jax.block_until_ready(model_forward(x, w1, b1, gamma, beta, w2, b2))
    ref = jax.block_until_ready(reference_forward(x, w1, b1, gamma, beta, w2, b2))

    assert out.shape == (2, 1, 14, 14), out.shape
    assert bool(jnp.all(jnp.isfinite(out)))
    assert bool(jnp.allclose(out, ref, rtol=1e-3, atol=1e-3)), \
        float(jnp.max(jnp.abs(out - ref)))

    print("KERNEL_OK")
</pallas_src>

<mosaic_0001>
module attributes {stable_mosaic.version = 11 : i64} {
  func.func @fused_kernel(%arg0: memref<2x3x16x16xf32, #tpu.memory_space<any>>, %arg1: memref<27xf32, #tpu.memory_space<smem>>, %arg2: memref<1xf32, #tpu.memory_space<smem>>, %arg3: memref<1xf32, #tpu.memory_space<smem>>, %arg4: memref<9xf32, #tpu.memory_space<smem>>, %arg5: memref<1xf32, #tpu.memory_space<smem>>, %arg6: memref<2x14x14xf32, #tpu.memory_space<vmem>>, %arg7: memref<2x3x18x18xf32, #tpu.memory_space<vmem>>, %arg8: memref<2x16x16xf32, #tpu.memory_space<vmem>>, %arg9: memref<!tpu.dma_semaphore, #tpu.memory_space<semaphore_mem>>) attributes {dimension_semantics = [], scalar_prefetch = 0 : i64, scratch_operands = 3 : i64, tpu.core_type = #tpu.core_type<tc>} {
    %c0_i32 = arith.constant 0 : i32
    %c0_i32_0 = arith.constant 0 : i32
    %c1_i32 = arith.constant 1 : i32
    %c1_i32_1 = arith.constant 1 : i32
    %0 = tpu.memref_slice %arg7[%c0_i32, %c0_i32_0, %c1_i32, %c1_i32_1] : memref<2x3x18x18xf32, #tpu.memory_space<vmem>> -> memref<2x3x16x16xf32, #tpu.memory_space<vmem>>
    tpu.enqueue_dma source(%arg0 : memref<2x3x16x16xf32, #tpu.memory_space<any>>) target(%0 : memref<2x3x16x16xf32, #tpu.memory_space<vmem>>) target_semaphore(%arg9 : memref<!tpu.dma_semaphore, #tpu.memory_space<semaphore_mem>>)
    %cst = arith.constant 0.000000e+00 : f32
    %1 = vector.broadcast %cst : f32 to vector<2x3x1x18xf32>
    %c0 = arith.constant 0 : index
    %c0_2 = arith.constant 0 : index
    %c0_3 = arith.constant 0 : index
    %c0_4 = arith.constant 0 : index
    %2 = vector.load %arg7[%c0, %c0_2, %c0_3, %c0_4] : memref<2x3x18x18xf32, #tpu.memory_space<vmem>>, vector<2x3x1x18xf32>
    tpu.vector_store %arg7[%c0, %c0_2, %c0_3, %c0_4], %1 {strides = array<i32>} : memref<2x3x18x18xf32, #tpu.memory_space<vmem>>, vector<2x3x1x18xf32>,
    %cst_5 = arith.constant 0.000000e+00 : f32
    %3 = vector.broadcast %cst_5 : f32 to vector<2x3x1x18xf32>
    %c0_6 = arith.constant 0 : index
    %c0_7 = arith.constant 0 : index
    %c17 = arith.constant 17 : index
    %c0_8 = arith.constant 0 : index
    %4 = vector.load %arg7[%c0_6, %c0_7, %c17, %c0_8] : memref<2x3x18x18xf32, #tpu.memory_space<vmem>>, vector<2x3x1x18xf32>
    tpu.vector_store %arg7[%c0_6, %c0_7, %c17, %c0_8], %3 {strides = array<i32>} : memref<2x3x18x18xf32, #tpu.memory_space<vmem>>, vector<2x3x1x18xf32>,
    %cst_9 = arith.constant 0.000000e+00 : f32
    %5 = vector.broadcast %cst_9 : f32 to vector<2x3x16x1xf32>
    %c0_10 = arith.constant 0 : index
    %c0_11 = arith.constant 0 : index
    %c1 = arith.constant 1 : index
    %c0_12 = arith.constant 0 : index
    %6 = vector.load %arg7[%c0_10, %c0_11, %c1, %c0_12] : memref<2x3x18x18xf32, #tpu.memory_space<vmem>>, vector<2x3x16x1xf32>
    tpu.vector_store %arg7[%c0_10, %c0_11, %c1, %c0_12], %5 {strides = array<i32>} : memref<2x3x18x18xf32, #tpu.memory_space<vmem>>, vector<2x3x16x1xf32>,
    %cst_13 = arith.constant 0.000000e+00 : f32
    %7 = vector.broadcast %cst_13 : f32 to vector<2x3x16x1xf32>
    %c0_14 = arith.constant 0 : index
    %c0_15 = arith.constant 0 : index
    %c1_16 = arith.constant 1 : index
    %c17_17 = arith.constant 17 : index
    %8 = vector.load %arg7[%c0_14, %c0_15, %c1_16, %c17_17] : memref<2x3x18x18xf32, #tpu.memory_space<vmem>>, vector<2x3x16x1xf32>
    tpu.vector_store %arg7[%c0_14, %c0_15, %c1_16, %c17_17], %7 {strides = array<i32>} : memref<2x3x18x18xf32, #tpu.memory_space<vmem>>, vector<2x3x16x1xf32>,
    %c0_i32_18 = arith.constant 0 : i32
    %c0_i32_19 = arith.constant 0 : i32
    %c1_i32_20 = arith.constant 1 : i32
    %c1_i32_21 = arith.constant 1 : i32
    %9 = tpu.memref_slice %arg7[%c0_i32_18, %c0_i32_19, %c1_i32_20, %c1_i32_21] : memref<2x3x18x18xf32, #tpu.memory_space<vmem>> -> memref<2x3x16x16xf32, #tpu.memory_space<vmem>>
    tpu.wait_dma2 semaphore(%arg9 : memref<!tpu.dma_semaphore, #tpu.memory_space<semaphore_mem>>) src(%arg0 : memref<2x3x16x16xf32, #tpu.memory_space<any>>) dst(%9 : memref<2x3x16x16xf32, #tpu.memory_space<vmem>>)
    %cst_22 = arith.constant 0.000000e+00 : f32
    %10 = vector.broadcast %cst_22 : f32 to vector<2x14x14xf32>
    %c0_23 = arith.constant 0 : index
    %c0_24 = arith.constant 0 : index
    %c0_25 = arith.constant 0 : index
    %c0_26 = arith.constant 0 : index
    %11 = vector.load %arg7[%c0_23, %c0_24, %c0_25, %c0_26] : memref<2x3x18x18xf32, #tpu.memory_space<vmem>>, vector<2x1x18x18xf32>
    %12 = vector.shape_cast %11 : vector<2x1x18x18xf32> to vector<2x18x18xf32>
    %c0_27 = arith.constant 0 : index
    %13 = memref.load %arg1[%c0_27] : memref<27xf32, #tpu.memory_space<smem>>
    %14 = vector.extract_strided_slice %12 {offsets = [0, 0, 0], sizes = [2, 14, 14], strides = [1, 1, 1]} : vector<2x18x18xf32> to vector<2x14x14xf32>
    %15 = vector.broadcast %13 : f32 to vector<2x14x14xf32>
    %16 = arith.mulf %14, %15 : vector<2x14x14xf32>
    %17 = arith.addf %10, %16 : vector<2x14x14xf32>
    %c1_28 = arith.constant 1 : index
    %18 = memref.load %arg1[%c1_28] : memref<27xf32, #tpu.memory_space<smem>>
    %19 = vector.extract_strided_slice %12 {offsets = [0, 0, 2], sizes = [2, 14, 14], strides = [1, 1, 1]} : vector<2x18x18xf32> to vector<2x14x14xf32>
    %20 = vector.broadcast %18 : f32 to vector<2x14x14xf32>
    %21 = arith.mulf %19, %20 : vector<2x14x14xf32>
    %22 = arith.addf %17, %21 : vector<2x14x14xf32>
    %c2 = arith.constant 2 : index
    %23 = memref.load %arg1[%c2] : memref<27xf32, #tpu.memory_space<smem>>
    %24 = vector.extract_strided_slice %12 {offsets = [0, 0, 4], sizes = [2, 14, 14], strides = [1, 1, 1]} : vector<2x18x18xf32> to vector<2x14x14xf32>
    %25 = vector.broadcast %23 : f32 to vector<2x14x14xf32>
    %26 = arith.mulf %24, %25 : vector<2x14x14xf32>
    %27 = arith.addf %22, %26 : vector<2x14x14xf32>
    %c3 = arith.constant 3 : index
    %28 = memref.load %arg1[%c3] : memref<27xf32, #tpu.memory_space<smem>>
    %29 = vector.extract_strided_slice %12 {offsets = [0, 2, 0], sizes = [2, 14, 14], strides = [1, 1, 1]} : vector<2x18x18xf32> to vector<2x14x14xf32>
    %30 = vector.broadcast %28 : f32 to vector<2x14x14xf32>
    %31 = arith.mulf %29, %30 : vector<2x14x14xf32>
    %32 = arith.addf %27, %31 : vector<2x14x14xf32>
    %c4 = arith.constant 4 : index
    %33 = memref.load %arg1[%c4] : memref<27xf32, #tpu.memory_space<smem>>
    %34 = vector.extract_strided_slice %12 {offsets = [0, 2, 2], sizes = [2, 14, 14], strides = [1, 1, 1]} : vector<2x18x18xf32> to vector<2x14x14xf32>
    %35 = vector.broadcast %33 : f32 to vector<2x14x14xf32>
    %36 = arith.mulf %34, %35 : vector<2x14x14xf32>
    %37 = arith.addf %32, %36 : vector<2x14x14xf32>
    %c5 = arith.constant 5 : index
    %38 = memref.load %arg1[%c5] : memref<27xf32, #tpu.memory_space<smem>>
    %39 = vector.extract_strided_slice %12 {offsets = [0, 2, 4], sizes = [2, 14, 14], strides = [1, 1, 1]} : vector<2x18x18xf32> to vector<2x14x14xf32>
    %40 = vector.broadcast %38 : f32 to vector<2x14x14xf32>
    %41 = arith.mulf %39, %40 : vector<2x14x14xf32>
    %42 = arith.addf %37, %41 : vector<2x14x14xf32>
    %c6 = arith.constant 6 : index
    %43 = memref.load %arg1[%c6] : memref<27xf32, #tpu.memory_space<smem>>
    %44 = vector.extract_strided_slice %12 {offsets = [0, 4, 0], sizes = [2, 14, 14], strides = [1, 1, 1]} : vector<2x18x18xf32> to vector<2x14x14xf32>
    %45 = vector.broadcast %43 : f32 to vector<2x14x14xf32>
    %46 = arith.mulf %44, %45 : vector<2x14x14xf32>
    %47 = arith.addf %42, %46 : vector<2x14x14xf32>
    %c7 = arith.constant 7 : index
    %48 = memref.load %arg1[%c7] : memref<27xf32, #tpu.memory_space<smem>>
    %49 = vector.extract_strided_slice %12 {offsets = [0, 4, 2], sizes = [2, 14, 14], strides = [1, 1, 1]} : vector<2x18x18xf32> to vector<2x14x14xf32>
    %50 = vector.broadcast %48 : f32 to vector<2x14x14xf32>
    %51 = arith.mulf %49, %50 : vector<2x14x14xf32>
    %52 = arith.addf %47, %51 : vector<2x14x14xf32>
    %c8 = arith.constant 8 : index
    %53 = memref.load %arg1[%c8] : memref<27xf32, #tpu.memory_space<smem>>
    %54 = vector.extract_strided_slice %12 {offsets = [0, 4, 4], sizes = [2, 14, 14], strides = [1, 1, 1]} : vector<2x18x18xf32> to vector<2x14x14xf32>
    %55 = vector.broadcast %53 : f32 to vector<2x14x14xf32>
    %56 = arith.mulf %54, %55 : vector<2x14x14xf32>
    %57 = arith.addf %52, %56 : vector<2x14x14xf32>
    %c0_29 = arith.constant 0 : index
    %c1_30 = arith.constant 1 : index
    %c0_31 = arith.constant 0 : index
    %c0_32 = arith.constant 0 : index
    %58 = vector.load %arg7[%c0_29, %c1_30, %c0_31, %c0_32] : memref<2x3x18x18xf32, #tpu.memory_space<vmem>>, vector<2x1x18x18xf32>
    %59 = vector.shape_cast %58 : vector<2x1x18x18xf32> to vector<2x18x18xf32>
    %c9 = arith.constant 9 : index
    %60 = memref.load %arg1[%c9] : memref<27xf32, #tpu.memory_space<smem>>
    %61 = vector.extract_strided_slice %59 {offsets = [0, 0, 0], sizes = [2, 14, 14], strides = [1, 1, 1]} : vector<2x18x18xf32> to vector<2x14x14xf32>
    %62 = vector.broadcast %60 : f32 to vector<2x14x14xf32>
    %63 = arith.mulf %61, %62 : vector<2x14x14xf32>
    %64 = arith.addf %57, %63 : vector<2x14x14xf32>
    %c10 = arith.constant 10 : index
    %65 = memref.load %arg1[%c10] : memref<27xf32, #tpu.memory_space<smem>>
    %66 = vector.extract_strided_slice %59 {offsets = [0, 0, 2], sizes = [2, 14, 14], strides = [1, 1, 1]} : vector<2x18x18xf32> to vector<2x14x14xf32>
    %67 = vector.broadcast %65 : f32 to vector<2x14x14xf32>
    %68 = arith.mulf %66, %67 : vector<2x14x14xf32>
    %69 = arith.addf %64, %68 : vector<2x14x14xf32>
    %c11 = arith.constant 11 : index
    %70 = memref.load %arg1[%c11] : memref<27xf32, #tpu.memory_space<smem>>
    %71 = vector.extract_strided_slice %59 {offsets = [0, 0, 4], sizes = [2, 14, 14], strides = [1, 1, 1]} : vector<2x18x18xf32> to vector<2x14x14xf32>
    %72 = vector.broadcast %70 : f32 to vector<2x14x14xf32>
    %73 = arith.mulf %71, %72 : vector<2x14x14xf32>
    %74 = arith.addf %69, %73 : vector<2x14x14xf32>
    %c12 = arith.constant 12 : index
    %75 = memref.load %arg1[%c12] : memref<27xf32, #tpu.memory_space<smem>>
    %76 = vector.extract_strided_slice %59 {offsets = [0, 2, 0], sizes = [2, 14, 14], strides = [1, 1, 1]} : vector<2x18x18xf32> to vector<2x14x14xf32>
    %77 = vector.broadcast %75 : f32 to vector<2x14x14xf32>
    %78 = arith.mulf %76, %77 : vector<2x14x14xf32>
    %79 = arith.addf %74, %78 : vector<2x14x14xf32>
    %c13 = arith.constant 13 : index
    %80 = memref.load %arg1[%c13] : memref<27xf32, #tpu.memory_space<smem>>
    %81 = vector.extract_strided_slice %59 {offsets = [0, 2, 2], sizes = [2, 14, 14], strides = [1, 1, 1]} : vector<2x18x18xf32> to vector<2x14x14xf32>
    %82 = vector.broadcast %80 : f32 to vector<2x14x14xf32>
    %83 = arith.mulf %81, %82 : vector<2x14x14xf32>
    %84 = arith.addf %79, %83 : vector<2x14x14xf32>
    %c14 = arith.constant 14 : index
    %85 = memref.load %arg1[%c14] : memref<27xf32, #tpu.memory_space<smem>>
    %86 = vector.extract_strided_slice %59 {offsets = [0, 2, 4], sizes = [2, 14, 14], strides = [1, 1, 1]} : vector<2x18x18xf32> to vector<2x14x14xf32>
    %87 = vector.broadcast %85 : f32 to vector<2x14x14xf32>
    %88 = arith.mulf %86, %87 : vector<2x14x14xf32>
    %89 = arith.addf %84, %88 : vector<2x14x14xf32>
    %c15 = arith.constant 15 : index
    %90 = memref.load %arg1[%c15] : memref<27xf32, #tpu.memory_space<smem>>
    %91 = vector.extract_strided_slice %59 {offsets = [0, 4, 0], sizes = [2, 14, 14], strides = [1, 1, 1]} : vector<2x18x18xf32> to vector<2x14x14xf32>
    %92 = vector.broadcast %90 : f32 to vector<2x14x14xf32>
    %93 = arith.mulf %91, %92 : vector<2x14x14xf32>
    %94 = arith.addf %89, %93 : vector<2x14x14xf32>
    %c16 = arith.constant 16 : index
    %95 = memref.load %arg1[%c16] : memref<27xf32, #tpu.memory_space<smem>>
    %96 = vector.extract_strided_slice %59 {offsets = [0, 4, 2], sizes = [2, 14, 14], strides = [1, 1, 1]} : vector<2x18x18xf32> to vector<2x14x14xf32>
    %97 = vector.broadcast %95 : f32 to vector<2x14x14xf32>
    %98 = arith.mulf %96, %97 : vector<2x14x14xf32>
    %99 = arith.addf %94, %98 : vector<2x14x14xf32>
    %c17_33 = arith.constant 17 : index
    %100 = memref.load %arg1[%c17_33] : memref<27xf32, #tpu.memory_space<smem>>
    %101 = vector.extract_strided_slice %59 {offsets = [0, 4, 4], sizes = [2, 14, 14], strides = [1, 1, 1]} : vector<2x18x18xf32> to vector<2x14x14xf32>
    %102 = vector.broadcast %100 : f32 to vector<2x14x14xf32>
    %103 = arith.mulf %101, %102 : vector<2x14x14xf32>
    %104 = arith.addf %99, %103 : vector<2x14x14xf32>
    %c0_34 = arith.constant 0 : index
    %c2_35 = arith.constant 2 : index
    %c0_36 = arith.constant 0 : index
    %c0_37 = arith.constant 0 : index
    %105 = vector.load %arg7[%c0_34, %c2_35, %c0_36, %c0_37] : memref<2x3x18x18xf32, #tpu.memory_space<vmem>>, vector<2x1x18x18xf32>
    %106 = vector.shape_cast %105 : vector<2x1x18x18xf32> to vector<2x18x18xf32>
    %c18 = arith.constant 18 : index
    %107 = memref.load %arg1[%c18] : memref<27xf32, #tpu.memory_space<smem>>
    %108 = vector.extract_strided_slice %106 {offsets = [0, 0, 0], sizes = [2, 14, 14], strides = [1, 1, 1]} : vector<2x18x18xf32> to vector<2x14x14xf32>
    %109 = vector.broadcast %107 : f32 to vector<2x14x14xf32>
    %110 = arith.mulf %108, %109 : vector<2x14x14xf32>
    %111 = arith.addf %104, %110 : vector<2x14x14xf32>
    %c19 = arith.constant 19 : index
    %112 = memref.load %arg1[%c19] : memref<27xf32, #tpu.memory_space<smem>>
    %113 = vector.extract_strided_slice %106 {offsets = [0, 0, 2], sizes = [2, 14, 14], strides = [1, 1, 1]} : vector<2x18x18xf32> to vector<2x14x14xf32>
    %114 = vector.broadcast %112 : f32 to vector<2x14x14xf32>
    %115 = arith.mulf %113, %114 : vector<2x14x14xf32>
    %116 = arith.addf %111, %115 : vector<2x14x14xf32>
    %c20 = arith.constant 20 : index
    %117 = memref.load %arg1[%c20] : memref<27xf32, #tpu.memory_space<smem>>
    %118 = vector.extract_strided_slice %106 {offsets = [0, 0, 4], sizes = [2, 14, 14], strides = [1, 1, 1]} : vector<2x18x18xf32> to vector<2x14x14xf32>
    %119 = vector.broadcast %117 : f32 to vector<2x14x14xf32>
    %120 = arith.mulf %118, %119 : vector<2x14x14xf32>
    %121 = arith.addf %116, %120 : vector<2x14x14xf32>
    %c21 = arith.constant 21 : index
    %122 = memref.load %arg1[%c21] : memref<27xf32, #tpu.memory_space<smem>>
    %123 = vector.extract_strided_slice %106 {offsets = [0, 2, 0], sizes = [2, 14, 14], strides = [1, 1, 1]} : vector<2x18x18xf32> to vector<2x14x14xf32>
    %124 = vector.broadcast %122 : f32 to vector<2x14x14xf32>
    %125 = arith.mulf %123, %124 : vector<2x14x14xf32>
    %126 = arith.addf %121, %125 : vector<2x14x14xf32>
    %c22 = arith.constant 22 : index
    %127 = memref.load %arg1[%c22] : memref<27xf32, #tpu.memory_space<smem>>
    %128 = vector.extract_strided_slice %106 {offsets = [0, 2, 2], sizes = [2, 14, 14], strides = [1, 1, 1]} : vector<2x18x18xf32> to vector<2x14x14xf32>
    %129 = vector.broadcast %127 : f32 to vector<2x14x14xf32>
    %130 = arith.mulf %128, %129 : vector<2x14x14xf32>
    %131 = arith.addf %126, %130 : vector<2x14x14xf32>
    %c23 = arith.constant 23 : index
    %132 = memref.load %arg1[%c23] : memref<27xf32, #tpu.memory_space<smem>>
    %133 = vector.extract_strided_slice %106 {offsets = [0, 2, 4], sizes = [2, 14, 14], strides = [1, 1, 1]} : vector<2x18x18xf32> to vector<2x14x14xf32>
    %134 = vector.broadcast %132 : f32 to vector<2x14x14xf32>
    %135 = arith.mulf %133, %134 : vector<2x14x14xf32>
    %136 = arith.addf %131, %135 : vector<2x14x14xf32>
    %c24 = arith.constant 24 : index
    %137 = memref.load %arg1[%c24] : memref<27xf32, #tpu.memory_space<smem>>
    %138 = vector.extract_strided_slice %106 {offsets = [0, 4, 0], sizes = [2, 14, 14], strides = [1, 1, 1]} : vector<2x18x18xf32> to vector<2x14x14xf32>
    %139 = vector.broadcast %137 : f32 to vector<2x14x14xf32>
    %140 = arith.mulf %138, %139 : vector<2x14x14xf32>
    %141 = arith.addf %136, %140 : vector<2x14x14xf32>
    %c25 = arith.constant 25 : index
    %142 = memref.load %arg1[%c25] : memref<27xf32, #tpu.memory_space<smem>>
    %143 = vector.extract_strided_slice %106 {offsets = [0, 4, 2], sizes = [2, 14, 14], strides = [1, 1, 1]} : vector<2x18x18xf32> to vector<2x14x14xf32>
    %144 = vector.broadcast %142 : f32 to vector<2x14x14xf32>
    %145 = arith.mulf %143, %144 : vector<2x14x14xf32>
    %146 = arith.addf %141, %145 : vector<2x14x14xf32>
    %c26 = arith.constant 26 : index
    %147 = memref.load %arg1[%c26] : memref<27xf32, #tpu.memory_space<smem>>
    %148 = vector.extract_strided_slice %106 {offsets = [0, 4, 4], sizes = [2, 14, 14], strides = [1, 1, 1]} : vector<2x18x18xf32> to vector<2x14x14xf32>
    %149 = vector.broadcast %147 : f32 to vector<2x14x14xf32>
    %150 = arith.mulf %148, %149 : vector<2x14x14xf32>
    %151 = arith.addf %146, %150 : vector<2x14x14xf32>
    %cst_38 = arith.constant dense<0.000000e+00> : vector<14x14xf32>
    %152 = vector.multi_reduction <add>, %151, %cst_38 [0] : vector<2x14x14xf32> to vector<14x14xf32>
    %153 = arith.mulf %151, %151 : vector<2x14x14xf32>
    %cst_39 = arith.constant dense<0.000000e+00> : vector<14x14xf32>
    %154 = vector.multi_reduction <add>, %153, %cst_39 [0] : vector<2x14x14xf32> to vector<14x14xf32>
    %155 = vector.shape_cast %152 : vector<14x14xf32> to vector<1x14x14xf32>
    %156 = vector.shape_cast %154 : vector<14x14xf32> to vector<1x14x14xf32>
    %157 = tpu.concatenate %155, %156 in 0 : vector<1x14x14xf32>, vector<1x14x14xf32> -> vector<2x14x14xf32>
    %cst_40 = arith.constant dense<0.000000e+00> : vector<2x14xf32>
    %158 = vector.multi_reduction <add>, %157, %cst_40 [2] : vector<2x14x14xf32> to vector<2x14xf32>
    %159 = vector.shape_cast %158 : vector<2x14xf32> to vector<2x14x1xf32>
    %160 = vector.extract_strided_slice %159 {offsets = [0, 0, 0], sizes = [1, 14, 1], strides = [1, 1, 1]} : vector<2x14x1xf32> to vector<1x14x1xf32>
    %161 = vector.shape_cast %160 : vector<1x14x1xf32> to vector<14x1xf32>
    %162 = vector.shape_cast %161 : vector<14x1xf32> to vector<1x14x1xf32>
    %cst_41 = arith.constant dense<0.000000e+00> : vector<1xf32>
    %163 = vector.multi_reduction <add>, %162, %cst_41 [1, 2] : vector<1x14x1xf32> to vector<1xf32>
    %164 = vector.shape_cast %163 : vector<1xf32> to vector<1x1x1xf32>
    %165 = vector.extract %164[0, 0, 0] : f32 from vector<1x1x1xf32>
    %cst_42 = arith.constant 0.00255102036 : f32
    %166 = arith.mulf %165, %cst_42 : f32
    %167 = vector.extract_strided_slice %159 {offsets = [1, 0, 0], sizes = [1, 14, 1], strides = [1, 1, 1]} : vector<2x14x1xf32> to vector<1x14x1xf32>
    %168 = vector.shape_cast %167 : vector<1x14x1xf32> to vector<14x1xf32>
    %169 = vector.shape_cast %168 : vector<14x1xf32> to vector<1x14x1xf32>
    %cst_43 = arith.constant dense<0.000000e+00> : vector<1xf32>
    %170 = vector.multi_reduction <add>, %169, %cst_43 [1, 2] : vector<1x14x1xf32> to vector<1xf32>
    %171 = vector.shape_cast %170 : vector<1xf32> to vector<1x1x1xf32>
    %172 = vector.extract %171[0, 0, 0] : f32 from vector<1x1x1xf32>
    %cst_44 = arith.constant 0.00255102036 : f32
    %173 = arith.mulf %172, %cst_44 : f32
    %174 = arith.mulf %166, %166 : f32
    %175 = arith.subf %173, %174 : f32
    %cst_45 = arith.constant 0.000000e+00 : f32
    %176 = arith.maximumf %175, %cst_45 : f32
    %c0_46 = arith.constant 0 : index
    %177 = memref.load %arg2[%c0_46] : memref<1xf32, #tpu.memory_space<smem>>
    %cst_47 = arith.constant 2.000000e+00 : f32
    %178 = arith.mulf %cst_47, %177 : f32
    %cst_48 = arith.constant 4.000000e+00 : f32
    %179 = arith.mulf %cst_48, %176 : f32
    %cst_49 = arith.constant 9.99999974E-6 : f32
    %180 = arith.addf %179, %cst_49 : f32
    %181 = math.rsqrt %180 : f32
    %182 = arith.mulf %178, %181 : f32
    %c0_50 = arith.constant 0 : index
    %183 = memref.load %arg3[%c0_50] : memref<1xf32, #tpu.memory_space<smem>>
    %184 = arith.mulf %182, %166 : f32
    %185 = arith.subf %183, %184 : f32
    %cst_51 = arith.constant 0.000000e+00 : f32
    %186 = vector.broadcast %cst_51 : f32 to vector<2x1x16xf32>
    %c0_52 = arith.constant 0 : index
    %c0_53 = arith.constant 0 : index
    %c0_54 = arith.constant 0 : index
    %187 = vector.load %arg8[%c0_52, %c0_53, %c0_54] : memref<2x16x16xf32, #tpu.memory_space<vmem>>, vector<2x1x16xf32>
    tpu.vector_store %arg8[%c0_52, %c0_53, %c0_54], %186 {strides = array<i32>} : memref<2x16x16xf32, #tpu.memory_space<vmem>>, vector<2x1x16xf32>,
    %cst_55 = arith.constant 0.000000e+00 : f32
    %188 = vector.broadcast %cst_55 : f32 to vector<2x1x16xf32>
    %c0_56 = arith.constant 0 : index
    %c15_57 = arith.constant 15 : index
    %c0_58 = arith.constant 0 : index
    %189 = vector.load %arg8[%c0_56, %c15_57, %c0_58] : memref<2x16x16xf32, #tpu.memory_space<vmem>>, vector<2x1x16xf32>
    tpu.vector_store %arg8[%c0_56, %c15_57, %c0_58], %188 {strides = array<i32>} : memref<2x16x16xf32, #tpu.memory_space<vmem>>, vector<2x1x16xf32>,
    %cst_59 = arith.constant 0.000000e+00 : f32
    %190 = vector.broadcast %cst_59 : f32 to vector<2x14x1xf32>
    %c0_60 = arith.constant 0 : index
    %c1_61 = arith.constant 1 : index
    %c0_62 = arith.constant 0 : index
    %191 = vector.load %arg8[%c0_60, %c1_61, %c0_62] : memref<2x16x16xf32, #tpu.memory_space<vmem>>, vector<2x14x1xf32>
    tpu.vector_store %arg8[%c0_60, %c1_61, %c0_62], %190 {strides = array<i32>} : memref<2x16x16xf32, #tpu.memory_space<vmem>>, vector<2x14x1xf32>,
    %cst_63 = arith.constant 0.000000e+00 : f32
    %192 = vector.broadcast %cst_63 : f32 to vector<2x14x1xf32>
    %c0_64 = arith.constant 0 : index
    %c1_65 = arith.constant 1 : index
    %c15_66 = arith.constant 15 : index
    %193 = vector.load %arg8[%c0_64, %c1_65, %c15_66] : memref<2x16x16xf32, #tpu.memory_space<vmem>>, vector<2x14x1xf32>
    tpu.vector_store %arg8[%c0_64, %c1_65, %c15_66], %192 {strides = array<i32>} : memref<2x16x16xf32, #tpu.memory_space<vmem>>, vector<2x14x1xf32>,
    %c0_67 = arith.constant 0 : index
    %c1_68 = arith.constant 1 : index
    %c1_69 = arith.constant 1 : index
    %194 = vector.load %arg8[%c0_67, %c1_68, %c1_69] : memref<2x16x16xf32, #tpu.memory_space<vmem>>, vector<2x14x14xf32>
    tpu.vector_store %arg8[%c0_67, %c1_68, %c1_69], %151 {strides = array<i32>} : memref<2x16x16xf32, #tpu.memory_space<vmem>>, vector<2x14x14xf32>,
    %c0_70 = arith.constant 0 : index
    %c0_71 = arith.constant 0 : index
    %c0_72 = arith.constant 0 : index
    %195 = vector.load %arg8[%c0_70, %c0_71, %c0_72] : memref<2x16x16xf32, #tpu.memory_space<vmem>>, vector<2x16x16xf32>
    %cst_73 = arith.constant 0.000000e+00 : f32
    %196 = vector.broadcast %cst_73 : f32 to vector<2x14x14xf32>
    %197 = vector.extract_strided_slice %195 {offsets = [0, 0, 0], sizes = [2, 14, 14], strides = [1, 1, 1]} : vector<2x16x16xf32> to vector<2x14x14xf32>
    %c0_74 = arith.constant 0 : index
    %198 = memref.load %arg4[%c0_74] : memref<9xf32, #tpu.memory_space<smem>>
    %199 = vector.broadcast %198 : f32 to vector<2x14x14xf32>
    %200 = arith.mulf %197, %199 : vector<2x14x14xf32>
    %201 = arith.addf %196, %200 : vector<2x14x14xf32>
    %202 = vector.extract_strided_slice %195 {offsets = [0, 0, 1], sizes = [2, 14, 14], strides = [1, 1, 1]} : vector<2x16x16xf32> to vector<2x14x14xf32>
    %c1_75 = arith.constant 1 : index
    %203 = memref.load %arg4[%c1_75] : memref<9xf32, #tpu.memory_space<smem>>
    %204 = vector.broadcast %203 : f32 to vector<2x14x14xf32>
    %205 = arith.mulf %202, %204 : vector<2x14x14xf32>
    %206 = arith.addf %201, %205 : vector<2x14x14xf32>
    %207 = vector.extract_strided_slice %195 {offsets = [0, 0, 2], sizes = [2, 14, 14], strides = [1, 1, 1]} : vector<2x16x16xf32> to vector<2x14x14xf32>
    %c2_76 = arith.constant 2 : index
    %208 = memref.load %arg4[%c2_76] : memref<9xf32, #tpu.memory_space<smem>>
    %209 = vector.broadcast %208 : f32 to vector<2x14x14xf32>
    %210 = arith.mulf %207, %209 : vector<2x14x14xf32>
    %211 = arith.addf %206, %210 : vector<2x14x14xf32>
    %212 = vector.extract_strided_slice %195 {offsets = [0, 1, 0], sizes = [2, 14, 14], strides = [1, 1, 1]} : vector<2x16x16xf32> to vector<2x14x14xf32>
    %c3_77 = arith.constant 3 : index
    %213 = memref.load %arg4[%c3_77] : memref<9xf32, #tpu.memory_space<smem>>
    %214 = vector.broadcast %213 : f32 to vector<2x14x14xf32>
    %215 = arith.mulf %212, %214 : vector<2x14x14xf32>
    %216 = arith.addf %211, %215 : vector<2x14x14xf32>
    %217 = vector.extract_strided_slice %195 {offsets = [0, 1, 1], sizes = [2, 14, 14], strides = [1, 1, 1]} : vector<2x16x16xf32> to vector<2x14x14xf32>
    %c4_78 = arith.constant 4 : index
    %218 = memref.load %arg4[%c4_78] : memref<9xf32, #tpu.memory_space<smem>>
    %219 = vector.broadcast %218 : f32 to vector<2x14x14xf32>
    %220 = arith.mulf %217, %219 : vector<2x14x14xf32>
    %221 = arith.addf %216, %220 : vector<2x14x14xf32>
    %222 = vector.extract_strided_slice %195 {offsets = [0, 1, 2], sizes = [2, 14, 14], strides = [1, 1, 1]} : vector<2x16x16xf32> to vector<2x14x14xf32>
    %c5_79 = arith.constant 5 : index
    %223 = memref.load %arg4[%c5_79] : memref<9xf32, #tpu.memory_space<smem>>
    %224 = vector.broadcast %223 : f32 to vector<2x14x14xf32>
    %225 = arith.mulf %222, %224 : vector<2x14x14xf32>
    %226 = arith.addf %221, %225 : vector<2x14x14xf32>
    %227 = vector.extract_strided_slice %195 {offsets = [0, 2, 0], sizes = [2, 14, 14], strides = [1, 1, 1]} : vector<2x16x16xf32> to vector<2x14x14xf32>
    %c6_80 = arith.constant 6 : index
    %228 = memref.load %arg4[%c6_80] : memref<9xf32, #tpu.memory_space<smem>>
    %229 = vector.broadcast %228 : f32 to vector<2x14x14xf32>
    %230 = arith.mulf %227, %229 : vector<2x14x14xf32>
    %231 = arith.addf %226, %230 : vector<2x14x14xf32>
    %232 = vector.extract_strided_slice %195 {offsets = [0, 2, 1], sizes = [2, 14, 14], strides = [1, 1, 1]} : vector<2x16x16xf32> to vector<2x14x14xf32>
    %c7_81 = arith.constant 7 : index
    %233 = memref.load %arg4[%c7_81] : memref<9xf32, #tpu.memory_space<smem>>
    %234 = vector.broadcast %233 : f32 to vector<2x14x14xf32>
    %235 = arith.mulf %232, %234 : vector<2x14x14xf32>
    %236 = arith.addf %231, %235 : vector<2x14x14xf32>
    %237 = vector.extract_strided_slice %195 {offsets = [0, 2, 2], sizes = [2, 14, 14], strides = [1, 1, 1]} : vector<2x16x16xf32> to vector<2x14x14xf32>
    %c8_82 = arith.constant 8 : index
    %238 = memref.load %arg4[%c8_82] : memref<9xf32, #tpu.memory_space<smem>>
    %239 = vector.broadcast %238 : f32 to vector<2x14x14xf32>
    %240 = arith.mulf %237, %239 : vector<2x14x14xf32>
    %241 = arith.addf %236, %240 : vector<2x14x14xf32>
    %242 = tpu.iota {dimensions = array<i32: 0>} : vector<14x14xi32>
    %243 = tpu.iota {dimensions = array<i32: 1>} : vector<14x14xi32>
    %cst_83 = arith.constant 0.000000e+00 : f32
    %244 = vector.broadcast %cst_83 : f32 to vector<14x14xf32>
    %c0_i32_84 = arith.constant 0 : i32
    %245 = vector.broadcast %c0_i32_84 : i32 to vector<14x14xi32>
    %246 = arith.addi %242, %245 : vector<14x14xi32>
    %c1_i32_85 = arith.constant 1 : i32
    %247 = vector.broadcast %c1_i32_85 : i32 to vector<14x14xi32>
    %248 = arith.cmpi sge, %246, %247 : vector<14x14xi32>
    %c0_i32_86 = arith.constant 0 : i32
    %249 = vector.broadcast %c0_i32_86 : i32 to vector<14x14xi32>
    %250 = arith.addi %242, %249 : vector<14x14xi32>
    %c14_i32 = arith.constant 14 : i32
    %251 = vector.broadcast %c14_i32 : i32 to vector<14x14xi32>
    %252 = arith.cmpi sle, %250, %251 : vector<14x14xi32>
    %253 = arith.andi %248, %252 : vector<14x14xi1>
    %c0_i32_87 = arith.constant 0 : i32
    %254 = vector.broadcast %c0_i32_87 : i32 to vector<14x14xi32>
    %255 = arith.addi %243, %254 : vector<14x14xi32>
    %c1_i32_88 = arith.constant 1 : i32
    %256 = vector.broadcast %c1_i32_88 : i32 to vector<14x14xi32>
    %257 = arith.cmpi sge, %255, %256 : vector<14x14xi32>
    %c0_i32_89 = arith.constant 0 : i32
    %258 = vector.broadcast %c0_i32_89 : i32 to vector<14x14xi32>
    %259 = arith.addi %243, %258 : vector<14x14xi32>
    %c14_i32_90 = arith.constant 14 : i32
    %260 = vector.broadcast %c14_i32_90 : i32 to vector<14x14xi32>
    %261 = arith.cmpi sle, %259, %260 : vector<14x14xi32>
    %262 = arith.andi %257, %261 : vector<14x14xi1>
    %263 = arith.andi %253, %262 : vector<14x14xi1>
    %c0_91 = arith.constant 0 : index
    %264 = memref.load %arg4[%c0_91] : memref<9xf32, #tpu.memory_space<smem>>
    %cst_92 = arith.constant 0.000000e+00 : f32
    %265 = vector.broadcast %264 : f32 to vector<14x14xf32>
    %266 = vector.broadcast %cst_92 : f32 to vector<14x14xf32>
    %267 = arith.select %263, %265, %266 : vector<14x14xi1>, vector<14x14xf32>
    %268 = arith.addf %244, %267 : vector<14x14xf32>
    %c1_i32_93 = arith.constant 1 : i32
    %269 = vector.broadcast %c1_i32_93 : i32 to vector<14x14xi32>
    %270 = arith.addi %243, %269 : vector<14x14xi32>
    %c1_i32_94 = arith.constant 1 : i32
    %271 = vector.broadcast %c1_i32_94 : i32 to vector<14x14xi32>
    %272 = arith.cmpi sge, %270, %271 : vector<14x14xi32>
    %c1_i32_95 = arith.constant 1 : i32
    %273 = vector.broadcast %c1_i32_95 : i32 to vector<14x14xi32>
    %274 = arith.addi %243, %273 : vector<14x14xi32>
    %c14_i32_96 = arith.constant 14 : i32
    %275 = vector.broadcast %c14_i32_96 : i32 to vector<14x14xi32>
    %276 = arith.cmpi sle, %274, %275 : vector<14x14xi32>
    %277 = arith.andi %272, %276 : vector<14x14xi1>
    %278 = arith.andi %253, %277 : vector<14x14xi1>
    %c1_97 = arith.constant 1 : index
    %279 = memref.load %arg4[%c1_97] : memref<9xf32, #tpu.memory_space<smem>>
    %cst_98 = arith.constant 0.000000e+00 : f32
    %280 = vector.broadcast %279 : f32 to vector<14x14xf32>
    %281 = vector.broadcast %cst_98 : f32 to vector<14x14xf32>
    %282 = arith.select %278, %280, %281 : vector<14x14xi1>, vector<14x14xf32>
    %283 = arith.addf %268, %282 : vector<14x14xf32>
    %c2_i32 = arith.constant 2 : i32
    %284 = vector.broadcast %c2_i32 : i32 to vector<14x14xi32>
    %285 = arith.addi %243, %284 : vector<14x14xi32>
    %c1_i32_99 = arith.constant 1 : i32
    %286 = vector.broadcast %c1_i32_99 : i32 to vector<14x14xi32>
    %287 = arith.cmpi sge, %285, %286 : vector<14x14xi32>
    %c2_i32_100 = arith.constant 2 : i32
    %288 = vector.broadcast %c2_i32_100 : i32 to vector<14x14xi32>
    %289 = arith.addi %243, %288 : vector<14x14xi32>
    %c14_i32_101 = arith.constant 14 : i32
    %290 = vector.broadcast %c14_i32_101 : i32 to vector<14x14xi32>
    %291 = arith.cmpi sle, %289, %290 : vector<14x14xi32>
    %292 = arith.andi %287, %291 : vector<14x14xi1>
    %293 = arith.andi %253, %292 : vector<14x14xi1>
    %c2_102 = arith.constant 2 : index
    %294 = memref.load %arg4[%c2_102] : memref<9xf32, #tpu.memory_space<smem>>
    %cst_103 = arith.constant 0.000000e+00 : f32
    %295 = vector.broadcast %294 : f32 to vector<14x14xf32>
    %296 = vector.broadcast %cst_103 : f32 to vector<14x14xf32>
    %297 = arith.select %293, %295, %296 : vector<14x14xi1>, vector<14x14xf32>
    %298 = arith.addf %283, %297 : vector<14x14xf32>
    %c1_i32_104 = arith.constant 1 : i32
    %299 = vector.broadcast %c1_i32_104 : i32 to vector<14x14xi32>
    %300 = arith.addi %242, %299 : vector<14x14xi32>
    %c1_i32_105 = arith.constant 1 : i32
    %301 = vector.broadcast %c1_i32_105 : i32 to vector<14x14xi32>
    %302 = arith.cmpi sge, %300, %301 : vector<14x14xi32>
    %c1_i32_106 = arith.constant 1 : i32
    %303 = vector.broadcast %c1_i32_106 : i32 to vector<14x14xi32>
    %304 = arith.addi %242, %303 : vector<14x14xi32>
    %c14_i32_107 = arith.constant 14 : i32
    %305 = vector.broadcast %c14_i32_107 : i32 to vector<14x14xi32>
    %306 = arith.cmpi sle, %304, %305 : vector<14x14xi32>
    %307 = arith.andi %302, %306 : vector<14x14xi1>
    %c0_i32_108 = arith.constant 0 : i32
    %308 = vector.broadcast %c0_i32_108 : i32 to vector<14x14xi32>
    %309 = arith.addi %243, %308 : vector<14x14xi32>
    %c1_i32_109 = arith.constant 1 : i32
    %310 = vector.broadcast %c1_i32_109 : i32 to vector<14x14xi32>
    %311 = arith.cmpi sge, %309, %310 : vector<14x14xi32>
    %c0_i32_110 = arith.constant 0 : i32
    %312 = vector.broadcast %c0_i32_110 : i32 to vector<14x14xi32>
    %313 = arith.addi %243, %312 : vector<14x14xi32>
    %c14_i32_111 = arith.constant 14 : i32
    %314 = vector.broadcast %c14_i32_111 : i32 to vector<14x14xi32>
    %315 = arith.cmpi sle, %313, %314 : vector<14x14xi32>
    %316 = arith.andi %311, %315 : vector<14x14xi1>
    %317 = arith.andi %307, %316 : vector<14x14xi1>
    %c3_112 = arith.constant 3 : index
    %318 = memref.load %arg4[%c3_112] : memref<9xf32, #tpu.memory_space<smem>>
    %cst_113 = arith.constant 0.000000e+00 : f32
    %319 = vector.broadcast %318 : f32 to vector<14x14xf32>
    %320 = vector.broadcast %cst_113 : f32 to vector<14x14xf32>
    %321 = arith.select %317, %319, %320 : vector<14x14xi1>, vector<14x14xf32>
    %322 = arith.addf %298, %321 : vector<14x14xf32>
    %c1_i32_114 = arith.constant 1 : i32
    %323 = vector.broadcast %c1_i32_114 : i32 to vector<14x14xi32>
    %324 = arith.addi %243, %323 : vector<14x14xi32>
    %c1_i32_115 = arith.constant 1 : i32
    %325 = vector.broadcast %c1_i32_115 : i32 to vector<14x14xi32>
    %326 = arith.cmpi sge, %324, %325 : vector<14x14xi32>
    %c1_i32_116 = arith.constant 1 : i32
    %327 = vector.broadcast %c1_i32_116 : i32 to vector<14x14xi32>
    %328 = arith.addi %243, %327 : vector<14x14xi32>
    %c14_i32_117 = arith.constant 14 : i32
    %329 = vector.broadcast %c14_i32_117 : i32 to vector<14x14xi32>
    %330 = arith.cmpi sle, %328, %329 : vector<14x14xi32>
    %331 = arith.andi %326, %330 : vector<14x14xi1>
    %332 = arith.andi %307, %331 : vector<14x14xi1>
    %c4_118 = arith.constant 4 : index
    %333 = memref.load %arg4[%c4_118] : memref<9xf32, #tpu.memory_space<smem>>
    %cst_119 = arith.constant 0.000000e+00 : f32
    %334 = vector.broadcast %333 : f32 to vector<14x14xf32>
    %335 = vector.broadcast %cst_119 : f32 to vector<14x14xf32>
    %336 = arith.select %332, %334, %335 : vector<14x14xi1>, vector<14x14xf32>
    %337 = arith.addf %322, %336 : vector<14x14xf32>
    %c2_i32_120 = arith.constant 2 : i32
    %338 = vector.broadcast %c2_i32_120 : i32 to vector<14x14xi32>
    %339 = arith.addi %243, %338 : vector<14x14xi32>
    %c1_i32_121 = arith.constant 1 : i32
    %340 = vector.broadcast %c1_i32_121 : i32 to vector<14x14xi32>
    %341 = arith.cmpi sge, %339, %340 : vector<14x14xi32>
    %c2_i32_122 = arith.constant 2 : i32
    %342 = vector.broadcast %c2_i32_122 : i32 to vector<14x14xi32>
    %343 = arith.addi %243, %342 : vector<14x14xi32>
    %c14_i32_123 = arith.constant 14 : i32
    %344 = vector.broadcast %c14_i32_123 : i32 to vector<14x14xi32>
    %345 = arith.cmpi sle, %343, %344 : vector<14x14xi32>
    %346 = arith.andi %341, %345 : vector<14x14xi1>
    %347 = arith.andi %307, %346 : vector<14x14xi1>
    %c5_124 = arith.constant 5 : index
    %348 = memref.load %arg4[%c5_124] : memref<9xf32, #tpu.memory_space<smem>>
    %cst_125 = arith.constant 0.000000e+00 : f32
    %349 = vector.broadcast %348 : f32 to vector<14x14xf32>
    %350 = vector.broadcast %cst_125 : f32 to vector<14x14xf32>
    %351 = arith.select %347, %349, %350 : vector<14x14xi1>, vector<14x14xf32>
    %352 = arith.addf %337, %351 : vector<14x14xf32>
    %c2_i32_126 = arith.constant 2 : i32
    %353 = vector.broadcast %c2_i32_126 : i32 to vector<14x14xi32>
    %354 = arith.addi %242, %353 : vector<14x14xi32>
    %c1_i32_127 = arith.constant 1 : i32
    %355 = vector.broadcast %c1_i32_127 : i32 to vector<14x14xi32>
    %356 = arith.cmpi sge, %354, %355 : vector<14x14xi32>
    %c2_i32_128 = arith.constant 2 : i32
    %357 = vector.broadcast %c2_i32_128 : i32 to vector<14x14xi32>
    %358 = arith.addi %242, %357 : vector<14x14xi32>
    %c14_i32_129 = arith.constant 14 : i32
    %359 = vector.broadcast %c14_i32_129 : i32 to vector<14x14xi32>
    %360 = arith.cmpi sle, %358, %359 : vector<14x14xi32>
    %361 = arith.andi %356, %360 : vector<14x14xi1>
    %c0_i32_130 = arith.constant 0 : i32
    %362 = vector.broadcast %c0_i32_130 : i32 to vector<14x14xi32>
    %363 = arith.addi %243, %362 : vector<14x14xi32>
    %c1_i32_131 = arith.constant 1 : i32
    %364 = vector.broadcast %c1_i32_131 : i32 to vector<14x14xi32>
    %365 = arith.cmpi sge, %363, %364 : vector<14x14xi32>
    %c0_i32_132 = arith.constant 0 : i32
    %366 = vector.broadcast %c0_i32_132 : i32 to vector<14x14xi32>
    %367 = arith.addi %243, %366 : vector<14x14xi32>
    %c14_i32_133 = arith.constant 14 : i32
    %368 = vector.broadcast %c14_i32_133 : i32 to vector<14x14xi32>
    %369 = arith.cmpi sle, %367, %368 : vector<14x14xi32>
    %370 = arith.andi %365, %369 : vector<14x14xi1>
    %371 = arith.andi %361, %370 : vector<14x14xi1>
    %c6_134 = arith.constant 6 : index
    %372 = memref.load %arg4[%c6_134] : memref<9xf32, #tpu.memory_space<smem>>
    %cst_135 = arith.constant 0.000000e+00 : f32
    %373 = vector.broadcast %372 : f32 to vector<14x14xf32>
    %374 = vector.broadcast %cst_135 : f32 to vector<14x14xf32>
    %375 = arith.select %371, %373, %374 : vector<14x14xi1>, vector<14x14xf32>
    %376 = arith.addf %352, %375 : vector<14x14xf32>
    %c1_i32_136 = arith.constant 1 : i32
    %377 = vector.broadcast %c1_i32_136 : i32 to vector<14x14xi32>
    %378 = arith.addi %243, %377 : vector<14x14xi32>
    %c1_i32_137 = arith.constant 1 : i32
    %379 = vector.broadcast %c1_i32_137 : i32 to vector<14x14xi32>
    %380 = arith.cmpi sge, %378, %379 : vector<14x14xi32>
    %c1_i32_138 = arith.constant 1 : i32
    %381 = vector.broadcast %c1_i32_138 : i32 to vector<14x14xi32>
    %382 = arith.addi %243, %381 : vector<14x14xi32>
    %c14_i32_139 = arith.constant 14 : i32
    %383 = vector.broadcast %c14_i32_139 : i32 to vector<14x14xi32>
    %384 = arith.cmpi sle, %382, %383 : vector<14x14xi32>
    %385 = arith.andi %380, %384 : vector<14x14xi1>
    %386 = arith.andi %361, %385 : vector<14x14xi1>
    %c7_140 = arith.constant 7 : index
    %387 = memref.load %arg4[%c7_140] : memref<9xf32, #tpu.memory_space<smem>>
    %cst_141 = arith.constant 0.000000e+00 : f32
    %388 = vector.broadcast %387 : f32 to vector<14x14xf32>
    %389 = vector.broadcast %cst_141 : f32 to vector<14x14xf32>
    %390 = arith.select %386, %388, %389 : vector<14x14xi1>, vector<14x14xf32>
    %391 = arith.addf %376, %390 : vector<14x14xf32>
    %c2_i32_142 = arith.constant 2 : i32
    %392 = vector.broadcast %c2_i32_142 : i32 to vector<14x14xi32>
    %393 = arith.addi %243, %392 : vector<14x14xi32>
    %c1_i32_143 = arith.constant 1 : i32
    %394 = vector.broadcast %c1_i32_143 : i32 to vector<14x14xi32>
    %395 = arith.cmpi sge, %393, %394 : vector<14x14xi32>
    %c2_i32_144 = arith.constant 2 : i32
    %396 = vector.broadcast %c2_i32_144 : i32 to vector<14x14xi32>
    %397 = arith.addi %243, %396 : vector<14x14xi32>
    %c14_i32_145 = arith.constant 14 : i32
    %398 = vector.broadcast %c14_i32_145 : i32 to vector<14x14xi32>
    %399 = arith.cmpi sle, %397, %398 : vector<14x14xi32>
    %400 = arith.andi %395, %399 : vector<14x14xi1>
    %401 = arith.andi %361, %400 : vector<14x14xi1>
    %c8_146 = arith.constant 8 : index
    %402 = memref.load %arg4[%c8_146] : memref<9xf32, #tpu.memory_space<smem>>
    %cst_147 = arith.constant 0.000000e+00 : f32
    %403 = vector.broadcast %402 : f32 to vector<14x14xf32>
    %404 = vector.broadcast %cst_147 : f32 to vector<14x14xf32>
    %405 = arith.select %401, %403, %404 : vector<14x14xi1>, vector<14x14xf32>
    %406 = arith.addf %391, %405 : vector<14x14xf32>
    %407 = vector.broadcast %185 : f32 to vector<14x14xf32>
    %408 = arith.mulf %407, %406 : vector<14x14xf32>
    %c0_148 = arith.constant 0 : index
    %409 = memref.load %arg5[%c0_148] : memref<1xf32, #tpu.memory_space<smem>>
    %410 = vector.broadcast %409 : f32 to vector<14x14xf32>
    %411 = arith.addf %408, %410 : vector<14x14xf32>
    %412 = vector.broadcast %182 : f32 to vector<2x14x14xf32>
    %413 = arith.mulf %412, %241 : vector<2x14x14xf32>
    %414 = vector.shape_cast %411 : vector<14x14xf32> to vector<1x14x14xf32>
    %415 = vector.broadcast %414 : vector<1x14x14xf32> to vector<2x14x14xf32>
    %416 = arith.addf %413, %415 : vector<2x14x14xf32>
    %c0_149 = arith.constant 0 : index
    %c0_150 = arith.constant 0 : index
    %c0_151 = arith.constant 0 : index
    %417 = vector.load %arg6[%c0_149, %c0_150, %c0_151] : memref<2x14x14xf32, #tpu.memory_space<vmem>>, vector<2x14x14xf32>
    tpu.vector_store %arg6[%c0_149, %c0_150, %c0_151], %416 {strides = array<i32>} : memref<2x14x14xf32, #tpu.memory_space<vmem>>, vector<2x14x14xf32>,
    return
  }
}

module attributes {stable_mosaic.version = 11 : i64} {
  func.func @fused_kernel(%arg0: memref<2x3x16x16xf32, #tpu.memory_space<vmem>>, %arg1: memref<27xf32, #tpu.memory_space<smem>>, %arg2: memref<1xf32, #tpu.memory_space<smem>>, %arg3: memref<1xf32, #tpu.memory_space<smem>>, %arg4: memref<9xf32, #tpu.memory_space<smem>>, %arg5: memref<1xf32, #tpu.memory_space<smem>>, %arg6: memref<2x14x14xf32, #tpu.memory_space<vmem>>, %arg7: memref<2x3x18x18xf32, #tpu.memory_space<vmem>>, %arg8: memref<2x16x16xf32, #tpu.memory_space<vmem>>) attributes {dimension_semantics = [], scalar_prefetch = 0 : i64, scratch_operands = 2 : i64, tpu.core_type = #tpu.core_type<tc>} {
    %cst = arith.constant 0.000000e+00 : f32
    %0 = vector.broadcast %cst : f32 to vector<2x3x1x18xf32>
    %c0 = arith.constant 0 : index
    %c0_0 = arith.constant 0 : index
    %c0_1 = arith.constant 0 : index
    %c0_2 = arith.constant 0 : index
    %1 = vector.load %arg7[%c0, %c0_0, %c0_1, %c0_2] : memref<2x3x18x18xf32, #tpu.memory_space<vmem>>, vector<2x3x1x18xf32>
    tpu.vector_store %arg7[%c0, %c0_0, %c0_1, %c0_2], %0 {strides = array<i32>} : memref<2x3x18x18xf32, #tpu.memory_space<vmem>>, vector<2x3x1x18xf32>,
    %cst_3 = arith.constant 0.000000e+00 : f32
    %2 = vector.broadcast %cst_3 : f32 to vector<2x3x1x18xf32>
    %c0_4 = arith.constant 0 : index
    %c0_5 = arith.constant 0 : index
    %c17 = arith.constant 17 : index
    %c0_6 = arith.constant 0 : index
    %3 = vector.load %arg7[%c0_4, %c0_5, %c17, %c0_6] : memref<2x3x18x18xf32, #tpu.memory_space<vmem>>, vector<2x3x1x18xf32>
    tpu.vector_store %arg7[%c0_4, %c0_5, %c17, %c0_6], %2 {strides = array<i32>} : memref<2x3x18x18xf32, #tpu.memory_space<vmem>>, vector<2x3x1x18xf32>,
    %cst_7 = arith.constant 0.000000e+00 : f32
    %4 = vector.broadcast %cst_7 : f32 to vector<2x3x16x1xf32>
    %c0_8 = arith.constant 0 : index
    %c0_9 = arith.constant 0 : index
    %c1 = arith.constant 1 : index
    %c0_10 = arith.constant 0 : index
    %5 = vector.load %arg7[%c0_8, %c0_9, %c1, %c0_10] : memref<2x3x18x18xf32, #tpu.memory_space<vmem>>, vector<2x3x16x1xf32>
    tpu.vector_store %arg7[%c0_8, %c0_9, %c1, %c0_10], %4 {strides = array<i32>} : memref<2x3x18x18xf32, #tpu.memory_space<vmem>>, vector<2x3x16x1xf32>,
    %cst_11 = arith.constant 0.000000e+00 : f32
    %6 = vector.broadcast %cst_11 : f32 to vector<2x3x16x1xf32>
    %c0_12 = arith.constant 0 : index
    %c0_13 = arith.constant 0 : index
    %c1_14 = arith.constant 1 : index
    %c17_15 = arith.constant 17 : index
    %7 = vector.load %arg7[%c0_12, %c0_13, %c1_14, %c17_15] : memref<2x3x18x18xf32, #tpu.memory_space<vmem>>, vector<2x3x16x1xf32>
    tpu.vector_store %arg7[%c0_12, %c0_13, %c1_14, %c17_15], %6 {strides = array<i32>} : memref<2x3x18x18xf32, #tpu.memory_space<vmem>>, vector<2x3x16x1xf32>,
    %c0_16 = arith.constant 0 : index
    %c0_17 = arith.constant 0 : index
    %c0_18 = arith.constant 0 : index
    %c0_19 = arith.constant 0 : index
    %8 = vector.load %arg0[%c0_16, %c0_17, %c0_18, %c0_19] : memref<2x3x16x16xf32, #tpu.memory_space<vmem>>, vector<2x3x16x16xf32>
    %c0_20 = arith.constant 0 : index
    %c0_21 = arith.constant 0 : index
    %c1_22 = arith.constant 1 : index
    %c1_23 = arith.constant 1 : index
    %9 = vector.load %arg7[%c0_20, %c0_21, %c1_22, %c1_23] : memref<2x3x18x18xf32, #tpu.memory_space<vmem>>, vector<2x3x16x16xf32>
    tpu.vector_store %arg7[%c0_20, %c0_21, %c1_22, %c1_23], %8 {strides = array<i32>} : memref<2x3x18x18xf32, #tpu.memory_space<vmem>>, vector<2x3x16x16xf32>,
    %cst_24 = arith.constant 0.000000e+00 : f32
    %10 = vector.broadcast %cst_24 : f32 to vector<2x14x14xf32>
    %c0_25 = arith.constant 0 : index
    %c0_26 = arith.constant 0 : index
    %c0_27 = arith.constant 0 : index
    %c0_28 = arith.constant 0 : index
    %11 = vector.load %arg7[%c0_25, %c0_26, %c0_27, %c0_28] : memref<2x3x18x18xf32, #tpu.memory_space<vmem>>, vector<2x1x18x18xf32>
    %12 = vector.shape_cast %11 : vector<2x1x18x18xf32> to vector<2x18x18xf32>
    %c0_29 = arith.constant 0 : index
    %13 = memref.load %arg1[%c0_29] : memref<27xf32, #tpu.memory_space<smem>>
    %14 = vector.extract_strided_slice %12 {offsets = [0, 0, 0], sizes = [2, 14, 14], strides = [1, 1, 1]} : vector<2x18x18xf32> to vector<2x14x14xf32>
    %15 = vector.broadcast %13 : f32 to vector<2x14x14xf32>
    %16 = arith.mulf %14, %15 : vector<2x14x14xf32>
    %17 = arith.addf %10, %16 : vector<2x14x14xf32>
    %c1_30 = arith.constant 1 : index
    %18 = memref.load %arg1[%c1_30] : memref<27xf32, #tpu.memory_space<smem>>
    %19 = vector.extract_strided_slice %12 {offsets = [0, 0, 2], sizes = [2, 14, 14], strides = [1, 1, 1]} : vector<2x18x18xf32> to vector<2x14x14xf32>
    %20 = vector.broadcast %18 : f32 to vector<2x14x14xf32>
    %21 = arith.mulf %19, %20 : vector<2x14x14xf32>
    %22 = arith.addf %17, %21 : vector<2x14x14xf32>
    %c2 = arith.constant 2 : index
    %23 = memref.load %arg1[%c2] : memref<27xf32, #tpu.memory_space<smem>>
    %24 = vector.extract_strided_slice %12 {offsets = [0, 0, 4], sizes = [2, 14, 14], strides = [1, 1, 1]} : vector<2x18x18xf32> to vector<2x14x14xf32>
    %25 = vector.broadcast %23 : f32 to vector<2x14x14xf32>
    %26 = arith.mulf %24, %25 : vector<2x14x14xf32>
    %27 = arith.addf %22, %26 : vector<2x14x14xf32>
    %c3 = arith.constant 3 : index
    %28 = memref.load %arg1[%c3] : memref<27xf32, #tpu.memory_space<smem>>
    %29 = vector.extract_strided_slice %12 {offsets = [0, 2, 0], sizes = [2, 14, 14], strides = [1, 1, 1]} : vector<2x18x18xf32> to vector<2x14x14xf32>
    %30 = vector.broadcast %28 : f32 to vector<2x14x14xf32>
    %31 = arith.mulf %29, %30 : vector<2x14x14xf32>
    %32 = arith.addf %27, %31 : vector<2x14x14xf32>
    %c4 = arith.constant 4 : index
    %33 = memref.load %arg1[%c4] : memref<27xf32, #tpu.memory_space<smem>>
    %34 = vector.extract_strided_slice %12 {offsets = [0, 2, 2], sizes = [2, 14, 14], strides = [1, 1, 1]} : vector<2x18x18xf32> to vector<2x14x14xf32>
    %35 = vector.broadcast %33 : f32 to vector<2x14x14xf32>
    %36 = arith.mulf %34, %35 : vector<2x14x14xf32>
    %37 = arith.addf %32, %36 : vector<2x14x14xf32>
    %c5 = arith.constant 5 : index
    %38 = memref.load %arg1[%c5] : memref<27xf32, #tpu.memory_space<smem>>
    %39 = vector.extract_strided_slice %12 {offsets = [0, 2, 4], sizes = [2, 14, 14], strides = [1, 1, 1]} : vector<2x18x18xf32> to vector<2x14x14xf32>
    %40 = vector.broadcast %38 : f32 to vector<2x14x14xf32>
    %41 = arith.mulf %39, %40 : vector<2x14x14xf32>
    %42 = arith.addf %37, %41 : vector<2x14x14xf32>
    %c6 = arith.constant 6 : index
    %43 = memref.load %arg1[%c6] : memref<27xf32, #tpu.memory_space<smem>>
    %44 = vector.extract_strided_slice %12 {offsets = [0, 4, 0], sizes = [2, 14, 14], strides = [1, 1, 1]} : vector<2x18x18xf32> to vector<2x14x14xf32>
    %45 = vector.broadcast %43 : f32 to vector<2x14x14xf32>
    %46 = arith.mulf %44, %45 : vector<2x14x14xf32>
    %47 = arith.addf %42, %46 : vector<2x14x14xf32>
    %c7 = arith.constant 7 : index
    %48 = memref.load %arg1[%c7] : memref<27xf32, #tpu.memory_space<smem>>
    %49 = vector.extract_strided_slice %12 {offsets = [0, 4, 2], sizes = [2, 14, 14], strides = [1, 1, 1]} : vector<2x18x18xf32> to vector<2x14x14xf32>
    %50 = vector.broadcast %48 : f32 to vector<2x14x14xf32>
    %51 = arith.mulf %49, %50 : vector<2x14x14xf32>
    %52 = arith.addf %47, %51 : vector<2x14x14xf32>
    %c8 = arith.constant 8 : index
    %53 = memref.load %arg1[%c8] : memref<27xf32, #tpu.memory_space<smem>>
    %54 = vector.extract_strided_slice %12 {offsets = [0, 4, 4], sizes = [2, 14, 14], strides = [1, 1, 1]} : vector<2x18x18xf32> to vector<2x14x14xf32>
    %55 = vector.broadcast %53 : f32 to vector<2x14x14xf32>
    %56 = arith.mulf %54, %55 : vector<2x14x14xf32>
    %57 = arith.addf %52, %56 : vector<2x14x14xf32>
    %c0_31 = arith.constant 0 : index
    %c1_32 = arith.constant 1 : index
    %c0_33 = arith.constant 0 : index
    %c0_34 = arith.constant 0 : index
    %58 = vector.load %arg7[%c0_31, %c1_32, %c0_33, %c0_34] : memref<2x3x18x18xf32, #tpu.memory_space<vmem>>, vector<2x1x18x18xf32>
    %59 = vector.shape_cast %58 : vector<2x1x18x18xf32> to vector<2x18x18xf32>
    %c9 = arith.constant 9 : index
    %60 = memref.load %arg1[%c9] : memref<27xf32, #tpu.memory_space<smem>>
    %61 = vector.extract_strided_slice %59 {offsets = [0, 0, 0], sizes = [2, 14, 14], strides = [1, 1, 1]} : vector<2x18x18xf32> to vector<2x14x14xf32>
    %62 = vector.broadcast %60 : f32 to vector<2x14x14xf32>
    %63 = arith.mulf %61, %62 : vector<2x14x14xf32>
    %64 = arith.addf %57, %63 : vector<2x14x14xf32>
    %c10 = arith.constant 10 : index
    %65 = memref.load %arg1[%c10] : memref<27xf32, #tpu.memory_space<smem>>
    %66 = vector.extract_strided_slice %59 {offsets = [0, 0, 2], sizes = [2, 14, 14], strides = [1, 1, 1]} : vector<2x18x18xf32> to vector<2x14x14xf32>
    %67 = vector.broadcast %65 : f32 to vector<2x14x14xf32>
    %68 = arith.mulf %66, %67 : vector<2x14x14xf32>
    %69 = arith.addf %64, %68 : vector<2x14x14xf32>
    %c11 = arith.constant 11 : index
    %70 = memref.load %arg1[%c11] : memref<27xf32, #tpu.memory_space<smem>>
    %71 = vector.extract_strided_slice %59 {offsets = [0, 0, 4], sizes = [2, 14, 14], strides = [1, 1, 1]} : vector<2x18x18xf32> to vector<2x14x14xf32>
    %72 = vector.broadcast %70 : f32 to vector<2x14x14xf32>
    %73 = arith.mulf %71, %72 : vector<2x14x14xf32>
    %74 = arith.addf %69, %73 : vector<2x14x14xf32>
    %c12 = arith.constant 12 : index
    %75 = memref.load %arg1[%c12] : memref<27xf32, #tpu.memory_space<smem>>
    %76 = vector.extract_strided_slice %59 {offsets = [0, 2, 0], sizes = [2, 14, 14], strides = [1, 1, 1]} : vector<2x18x18xf32> to vector<2x14x14xf32>
    %77 = vector.broadcast %75 : f32 to vector<2x14x14xf32>
    %78 = arith.mulf %76, %77 : vector<2x14x14xf32>
    %79 = arith.addf %74, %78 : vector<2x14x14xf32>
    %c13 = arith.constant 13 : index
    %80 = memref.load %arg1[%c13] : memref<27xf32, #tpu.memory_space<smem>>
    %81 = vector.extract_strided_slice %59 {offsets = [0, 2, 2], sizes = [2, 14, 14], strides = [1, 1, 1]} : vector<2x18x18xf32> to vector<2x14x14xf32>
    %82 = vector.broadcast %80 : f32 to vector<2x14x14xf32>
    %83 = arith.mulf %81, %82 : vector<2x14x14xf32>
    %84 = arith.addf %79, %83 : vector<2x14x14xf32>
    %c14 = arith.constant 14 : index
    %85 = memref.load %arg1[%c14] : memref<27xf32, #tpu.memory_space<smem>>
    %86 = vector.extract_strided_slice %59 {offsets = [0, 2, 4], sizes = [2, 14, 14], strides = [1, 1, 1]} : vector<2x18x18xf32> to vector<2x14x14xf32>
    %87 = vector.broadcast %85 : f32 to vector<2x14x14xf32>
    %88 = arith.mulf %86, %87 : vector<2x14x14xf32>
    %89 = arith.addf %84, %88 : vector<2x14x14xf32>
    %c15 = arith.constant 15 : index
    %90 = memref.load %arg1[%c15] : memref<27xf32, #tpu.memory_space<smem>>
    %91 = vector.extract_strided_slice %59 {offsets = [0, 4, 0], sizes = [2, 14, 14], strides = [1, 1, 1]} : vector<2x18x18xf32> to vector<2x14x14xf32>
    %92 = vector.broadcast %90 : f32 to vector<2x14x14xf32>
    %93 = arith.mulf %91, %92 : vector<2x14x14xf32>
    %94 = arith.addf %89, %93 : vector<2x14x14xf32>
    %c16 = arith.constant 16 : index
    %95 = memref.load %arg1[%c16] : memref<27xf32, #tpu.memory_space<smem>>
    %96 = vector.extract_strided_slice %59 {offsets = [0, 4, 2], sizes = [2, 14, 14], strides = [1, 1, 1]} : vector<2x18x18xf32> to vector<2x14x14xf32>
    %97 = vector.broadcast %95 : f32 to vector<2x14x14xf32>
    %98 = arith.mulf %96, %97 : vector<2x14x14xf32>
    %99 = arith.addf %94, %98 : vector<2x14x14xf32>
    %c17_35 = arith.constant 17 : index
    %100 = memref.load %arg1[%c17_35] : memref<27xf32, #tpu.memory_space<smem>>
    %101 = vector.extract_strided_slice %59 {offsets = [0, 4, 4], sizes = [2, 14, 14], strides = [1, 1, 1]} : vector<2x18x18xf32> to vector<2x14x14xf32>
    %102 = vector.broadcast %100 : f32 to vector<2x14x14xf32>
    %103 = arith.mulf %101, %102 : vector<2x14x14xf32>
    %104 = arith.addf %99, %103 : vector<2x14x14xf32>
    %c0_36 = arith.constant 0 : index
    %c2_37 = arith.constant 2 : index
    %c0_38 = arith.constant 0 : index
    %c0_39 = arith.constant 0 : index
    %105 = vector.load %arg7[%c0_36, %c2_37, %c0_38, %c0_39] : memref<2x3x18x18xf32, #tpu.memory_space<vmem>>, vector<2x1x18x18xf32>
    %106 = vector.shape_cast %105 : vector<2x1x18x18xf32> to vector<2x18x18xf32>
    %c18 = arith.constant 18 : index
    %107 = memref.load %arg1[%c18] : memref<27xf32, #tpu.memory_space<smem>>
    %108 = vector.extract_strided_slice %106 {offsets = [0, 0, 0], sizes = [2, 14, 14], strides = [1, 1, 1]} : vector<2x18x18xf32> to vector<2x14x14xf32>
    %109 = vector.broadcast %107 : f32 to vector<2x14x14xf32>
    %110 = arith.mulf %108, %109 : vector<2x14x14xf32>
    %111 = arith.addf %104, %110 : vector<2x14x14xf32>
    %c19 = arith.constant 19 : index
    %112 = memref.load %arg1[%c19] : memref<27xf32, #tpu.memory_space<smem>>
    %113 = vector.extract_strided_slice %106 {offsets = [0, 0, 2], sizes = [2, 14, 14], strides = [1, 1, 1]} : vector<2x18x18xf32> to vector<2x14x14xf32>
    %114 = vector.broadcast %112 : f32 to vector<2x14x14xf32>
    %115 = arith.mulf %113, %114 : vector<2x14x14xf32>
    %116 = arith.addf %111, %115 : vector<2x14x14xf32>
    %c20 = arith.constant 20 : index
    %117 = memref.load %arg1[%c20] : memref<27xf32, #tpu.memory_space<smem>>
    %118 = vector.extract_strided_slice %106 {offsets = [0, 0, 4], sizes = [2, 14, 14], strides = [1, 1, 1]} : vector<2x18x18xf32> to vector<2x14x14xf32>
    %119 = vector.broadcast %117 : f32 to vector<2x14x14xf32>
    %120 = arith.mulf %118, %119 : vector<2x14x14xf32>
    %121 = arith.addf %116, %120 : vector<2x14x14xf32>
    %c21 = arith.constant 21 : index
    %122 = memref.load %arg1[%c21] : memref<27xf32, #tpu.memory_space<smem>>
    %123 = vector.extract_strided_slice %106 {offsets = [0, 2, 0], sizes = [2, 14, 14], strides = [1, 1, 1]} : vector<2x18x18xf32> to vector<2x14x14xf32>
    %124 = vector.broadcast %122 : f32 to vector<2x14x14xf32>
    %125 = arith.mulf %123, %124 : vector<2x14x14xf32>
    %126 = arith.addf %121, %125 : vector<2x14x14xf32>
    %c22 = arith.constant 22 : index
    %127 = memref.load %arg1[%c22] : memref<27xf32, #tpu.memory_space<smem>>
    %128 = vector.extract_strided_slice %106 {offsets = [0, 2, 2], sizes = [2, 14, 14], strides = [1, 1, 1]} : vector<2x18x18xf32> to vector<2x14x14xf32>
    %129 = vector.broadcast %127 : f32 to vector<2x14x14xf32>
    %130 = arith.mulf %128, %129 : vector<2x14x14xf32>
    %131 = arith.addf %126, %130 : vector<2x14x14xf32>
    %c23 = arith.constant 23 : index
    %132 = memref.load %arg1[%c23] : memref<27xf32, #tpu.memory_space<smem>>
    %133 = vector.extract_strided_slice %106 {offsets = [0, 2, 4], sizes = [2, 14, 14], strides = [1, 1, 1]} : vector<2x18x18xf32> to vector<2x14x14xf32>
    %134 = vector.broadcast %132 : f32 to vector<2x14x14xf32>
    %135 = arith.mulf %133, %134 : vector<2x14x14xf32>
    %136 = arith.addf %131, %135 : vector<2x14x14xf32>
    %c24 = arith.constant 24 : index
    %137 = memref.load %arg1[%c24] : memref<27xf32, #tpu.memory_space<smem>>
    %138 = vector.extract_strided_slice %106 {offsets = [0, 4, 0], sizes = [2, 14, 14], strides = [1, 1, 1]} : vector<2x18x18xf32> to vector<2x14x14xf32>
    %139 = vector.broadcast %137 : f32 to vector<2x14x14xf32>
    %140 = arith.mulf %138, %139 : vector<2x14x14xf32>
    %141 = arith.addf %136, %140 : vector<2x14x14xf32>
    %c25 = arith.constant 25 : index
    %142 = memref.load %arg1[%c25] : memref<27xf32, #tpu.memory_space<smem>>
    %143 = vector.extract_strided_slice %106 {offsets = [0, 4, 2], sizes = [2, 14, 14], strides = [1, 1, 1]} : vector<2x18x18xf32> to vector<2x14x14xf32>
    %144 = vector.broadcast %142 : f32 to vector<2x14x14xf32>
    %145 = arith.mulf %143, %144 : vector<2x14x14xf32>
    %146 = arith.addf %141, %145 : vector<2x14x14xf32>
    %c26 = arith.constant 26 : index
    %147 = memref.load %arg1[%c26] : memref<27xf32, #tpu.memory_space<smem>>
    %148 = vector.extract_strided_slice %106 {offsets = [0, 4, 4], sizes = [2, 14, 14], strides = [1, 1, 1]} : vector<2x18x18xf32> to vector<2x14x14xf32>
    %149 = vector.broadcast %147 : f32 to vector<2x14x14xf32>
    %150 = arith.mulf %148, %149 : vector<2x14x14xf32>
    %151 = arith.addf %146, %150 : vector<2x14x14xf32>
    %cst_40 = arith.constant dense<0.000000e+00> : vector<14x14xf32>
    %152 = vector.multi_reduction <add>, %151, %cst_40 [0] : vector<2x14x14xf32> to vector<14x14xf32>
    %153 = arith.mulf %151, %151 : vector<2x14x14xf32>
    %cst_41 = arith.constant dense<0.000000e+00> : vector<14x14xf32>
    %154 = vector.multi_reduction <add>, %153, %cst_41 [0] : vector<2x14x14xf32> to vector<14x14xf32>
    %155 = vector.shape_cast %152 : vector<14x14xf32> to vector<1x14x14xf32>
    %156 = vector.shape_cast %154 : vector<14x14xf32> to vector<1x14x14xf32>
    %157 = tpu.concatenate %155, %156 in 0 : vector<1x14x14xf32>, vector<1x14x14xf32> -> vector<2x14x14xf32>
    %cst_42 = arith.constant dense<0.000000e+00> : vector<2x14xf32>
    %158 = vector.multi_reduction <add>, %157, %cst_42 [2] : vector<2x14x14xf32> to vector<2x14xf32>
    %159 = vector.shape_cast %158 : vector<2x14xf32> to vector<2x14x1xf32>
    %160 = vector.extract_strided_slice %159 {offsets = [0, 0, 0], sizes = [1, 14, 1], strides = [1, 1, 1]} : vector<2x14x1xf32> to vector<1x14x1xf32>
    %161 = vector.shape_cast %160 : vector<1x14x1xf32> to vector<14x1xf32>
    %162 = vector.shape_cast %161 : vector<14x1xf32> to vector<1x14x1xf32>
    %cst_43 = arith.constant dense<0.000000e+00> : vector<1xf32>
    %163 = vector.multi_reduction <add>, %162, %cst_43 [1, 2] : vector<1x14x1xf32> to vector<1xf32>
    %164 = vector.shape_cast %163 : vector<1xf32> to vector<1x1x1xf32>
    %165 = vector.extract %164[0, 0, 0] : f32 from vector<1x1x1xf32>
    %cst_44 = arith.constant 0.00255102036 : f32
    %166 = arith.mulf %165, %cst_44 : f32
    %167 = vector.extract_strided_slice %159 {offsets = [1, 0, 0], sizes = [1, 14, 1], strides = [1, 1, 1]} : vector<2x14x1xf32> to vector<1x14x1xf32>
    %168 = vector.shape_cast %167 : vector<1x14x1xf32> to vector<14x1xf32>
    %169 = vector.shape_cast %168 : vector<14x1xf32> to vector<1x14x1xf32>
    %cst_45 = arith.constant dense<0.000000e+00> : vector<1xf32>
    %170 = vector.multi_reduction <add>, %169, %cst_45 [1, 2] : vector<1x14x1xf32> to vector<1xf32>
    %171 = vector.shape_cast %170 : vector<1xf32> to vector<1x1x1xf32>
    %172 = vector.extract %171[0, 0, 0] : f32 from vector<1x1x1xf32>
    %cst_46 = arith.constant 0.00255102036 : f32
    %173 = arith.mulf %172, %cst_46 : f32
    %174 = arith.mulf %166, %166 : f32
    %175 = arith.subf %173, %174 : f32
    %cst_47 = arith.constant 0.000000e+00 : f32
    %176 = arith.maximumf %175, %cst_47 : f32
    %c0_48 = arith.constant 0 : index
    %177 = memref.load %arg2[%c0_48] : memref<1xf32, #tpu.memory_space<smem>>
    %cst_49 = arith.constant 2.000000e+00 : f32
    %178 = arith.mulf %cst_49, %177 : f32
    %cst_50 = arith.constant 4.000000e+00 : f32
    %179 = arith.mulf %cst_50, %176 : f32
    %cst_51 = arith.constant 9.99999974E-6 : f32
    %180 = arith.addf %179, %cst_51 : f32
    %181 = math.rsqrt %180 : f32
    %182 = arith.mulf %178, %181 : f32
    %c0_52 = arith.constant 0 : index
    %183 = memref.load %arg3[%c0_52] : memref<1xf32, #tpu.memory_space<smem>>
    %184 = arith.mulf %182, %166 : f32
    %185 = arith.subf %183, %184 : f32
    %cst_53 = arith.constant 0.000000e+00 : f32
    %186 = vector.broadcast %cst_53 : f32 to vector<2x1x16xf32>
    %c0_54 = arith.constant 0 : index
    %c0_55 = arith.constant 0 : index
    %c0_56 = arith.constant 0 : index
    %187 = vector.load %arg8[%c0_54, %c0_55, %c0_56] : memref<2x16x16xf32, #tpu.memory_space<vmem>>, vector<2x1x16xf32>
    tpu.vector_store %arg8[%c0_54, %c0_55, %c0_56], %186 {strides = array<i32>} : memref<2x16x16xf32, #tpu.memory_space<vmem>>, vector<2x1x16xf32>,
    %cst_57 = arith.constant 0.000000e+00 : f32
    %188 = vector.broadcast %cst_57 : f32 to vector<2x1x16xf32>
    %c0_58 = arith.constant 0 : index
    %c15_59 = arith.constant 15 : index
    %c0_60 = arith.constant 0 : index
    %189 = vector.load %arg8[%c0_58, %c15_59, %c0_60] : memref<2x16x16xf32, #tpu.memory_space<vmem>>, vector<2x1x16xf32>
    tpu.vector_store %arg8[%c0_58, %c15_59, %c0_60], %188 {strides = array<i32>} : memref<2x16x16xf32, #tpu.memory_space<vmem>>, vector<2x1x16xf32>,
    %cst_61 = arith.constant 0.000000e+00 : f32
    %190 = vector.broadcast %cst_61 : f32 to vector<2x14x1xf32>
    %c0_62 = arith.constant 0 : index
    %c1_63 = arith.constant 1 : index
    %c0_64 = arith.constant 0 : index
    %191 = vector.load %arg8[%c0_62, %c1_63, %c0_64] : memref<2x16x16xf32, #tpu.memory_space<vmem>>, vector<2x14x1xf32>
    tpu.vector_store %arg8[%c0_62, %c1_63, %c0_64], %190 {strides = array<i32>} : memref<2x16x16xf32, #tpu.memory_space<vmem>>, vector<2x14x1xf32>,
    %cst_65 = arith.constant 0.000000e+00 : f32
    %192 = vector.broadcast %cst_65 : f32 to vector<2x14x1xf32>
    %c0_66 = arith.constant 0 : index
    %c1_67 = arith.constant 1 : index
    %c15_68 = arith.constant 15 : index
    %193 = vector.load %arg8[%c0_66, %c1_67, %c15_68] : memref<2x16x16xf32, #tpu.memory_space<vmem>>, vector<2x14x1xf32>
    tpu.vector_store %arg8[%c0_66, %c1_67, %c15_68], %192 {strides = array<i32>} : memref<2x16x16xf32, #tpu.memory_space<vmem>>, vector<2x14x1xf32>,
    %c0_69 = arith.constant 0 : index
    %c1_70 = arith.constant 1 : index
    %c1_71 = arith.constant 1 : index
    %194 = vector.load %arg8[%c0_69, %c1_70, %c1_71] : memref<2x16x16xf32, #tpu.memory_space<vmem>>, vector<2x14x14xf32>
    tpu.vector_store %arg8[%c0_69, %c1_70, %c1_71], %151 {strides = array<i32>} : memref<2x16x16xf32, #tpu.memory_space<vmem>>, vector<2x14x14xf32>,
    %c0_72 = arith.constant 0 : index
    %c0_73 = arith.constant 0 : index
    %c0_74 = arith.constant 0 : index
    %195 = vector.load %arg8[%c0_72, %c0_73, %c0_74] : memref<2x16x16xf32, #tpu.memory_space<vmem>>, vector<2x16x16xf32>
    %cst_75 = arith.constant 0.000000e+00 : f32
    %196 = vector.broadcast %cst_75 : f32 to vector<2x14x14xf32>
    %197 = vector.extract_strided_slice %195 {offsets = [0, 0, 0], sizes = [2, 14, 14], strides = [1, 1, 1]} : vector<2x16x16xf32> to vector<2x14x14xf32>
    %c0_76 = arith.constant 0 : index
    %198 = memref.load %arg4[%c0_76] : memref<9xf32, #tpu.memory_space<smem>>
    %199 = vector.broadcast %198 : f32 to vector<2x14x14xf32>
    %200 = arith.mulf %197, %199 : vector<2x14x14xf32>
    %201 = arith.addf %196, %200 : vector<2x14x14xf32>
    %202 = vector.extract_strided_slice %195 {offsets = [0, 0, 1], sizes = [2, 14, 14], strides = [1, 1, 1]} : vector<2x16x16xf32> to vector<2x14x14xf32>
    %c1_77 = arith.constant 1 : index
    %203 = memref.load %arg4[%c1_77] : memref<9xf32, #tpu.memory_space<smem>>
    %204 = vector.broadcast %203 : f32 to vector<2x14x14xf32>
    %205 = arith.mulf %202, %204 : vector<2x14x14xf32>
    %206 = arith.addf %201, %205 : vector<2x14x14xf32>
    %207 = vector.extract_strided_slice %195 {offsets = [0, 0, 2], sizes = [2, 14, 14], strides = [1, 1, 1]} : vector<2x16x16xf32> to vector<2x14x14xf32>
    %c2_78 = arith.constant 2 : index
    %208 = memref.load %arg4[%c2_78] : memref<9xf32, #tpu.memory_space<smem>>
    %209 = vector.broadcast %208 : f32 to vector<2x14x14xf32>
    %210 = arith.mulf %207, %209 : vector<2x14x14xf32>
    %211 = arith.addf %206, %210 : vector<2x14x14xf32>
    %212 = vector.extract_strided_slice %195 {offsets = [0, 1, 0], sizes = [2, 14, 14], strides = [1, 1, 1]} : vector<2x16x16xf32> to vector<2x14x14xf32>
    %c3_79 = arith.constant 3 : index
    %213 = memref.load %arg4[%c3_79] : memref<9xf32, #tpu.memory_space<smem>>
    %214 = vector.broadcast %213 : f32 to vector<2x14x14xf32>
    %215 = arith.mulf %212, %214 : vector<2x14x14xf32>
    %216 = arith.addf %211, %215 : vector<2x14x14xf32>
    %217 = vector.extract_strided_slice %195 {offsets = [0, 1, 1], sizes = [2, 14, 14], strides = [1, 1, 1]} : vector<2x16x16xf32> to vector<2x14x14xf32>
    %c4_80 = arith.constant 4 : index
    %218 = memref.load %arg4[%c4_80] : memref<9xf32, #tpu.memory_space<smem>>
    %219 = vector.broadcast %218 : f32 to vector<2x14x14xf32>
    %220 = arith.mulf %217, %219 : vector<2x14x14xf32>
    %221 = arith.addf %216, %220 : vector<2x14x14xf32>
    %222 = vector.extract_strided_slice %195 {offsets = [0, 1, 2], sizes = [2, 14, 14], strides = [1, 1, 1]} : vector<2x16x16xf32> to vector<2x14x14xf32>
    %c5_81 = arith.constant 5 : index
    %223 = memref.load %arg4[%c5_81] : memref<9xf32, #tpu.memory_space<smem>>
    %224 = vector.broadcast %223 : f32 to vector<2x14x14xf32>
    %225 = arith.mulf %222, %224 : vector<2x14x14xf32>
    %226 = arith.addf %221, %225 : vector<2x14x14xf32>
    %227 = vector.extract_strided_slice %195 {offsets = [0, 2, 0], sizes = [2, 14, 14], strides = [1, 1, 1]} : vector<2x16x16xf32> to vector<2x14x14xf32>
    %c6_82 = arith.constant 6 : index
    %228 = memref.load %arg4[%c6_82] : memref<9xf32, #tpu.memory_space<smem>>
    %229 = vector.broadcast %228 : f32 to vector<2x14x14xf32>
    %230 = arith.mulf %227, %229 : vector<2x14x14xf32>
    %231 = arith.addf %226, %230 : vector<2x14x14xf32>
    %232 = vector.extract_strided_slice %195 {offsets = [0, 2, 1], sizes = [2, 14, 14], strides = [1, 1, 1]} : vector<2x16x16xf32> to vector<2x14x14xf32>
    %c7_83 = arith.constant 7 : index
    %233 = memref.load %arg4[%c7_83] : memref<9xf32, #tpu.memory_space<smem>>
    %234 = vector.broadcast %233 : f32 to vector<2x14x14xf32>
    %235 = arith.mulf %232, %234 : vector<2x14x14xf32>
    %236 = arith.addf %231, %235 : vector<2x14x14xf32>
    %237 = vector.extract_strided_slice %195 {offsets = [0, 2, 2], sizes = [2, 14, 14], strides = [1, 1, 1]} : vector<2x16x16xf32> to vector<2x14x14xf32>
    %c8_84 = arith.constant 8 : index
    %238 = memref.load %arg4[%c8_84] : memref<9xf32, #tpu.memory_space<smem>>
    %239 = vector.broadcast %238 : f32 to vector<2x14x14xf32>
    %240 = arith.mulf %237, %239 : vector<2x14x14xf32>
    %241 = arith.addf %236, %240 : vector<2x14x14xf32>
    %242 = tpu.iota {dimensions = array<i32: 0>} : vector<14x14xi32>
    %243 = tpu.iota {dimensions = array<i32: 1>} : vector<14x14xi32>
    %cst_85 = arith.constant 0.000000e+00 : f32
    %244 = vector.broadcast %cst_85 : f32 to vector<14x14xf32>
    %c0_i32 = arith.constant 0 : i32
    %245 = vector.broadcast %c0_i32 : i32 to vector<14x14xi32>
    %246 = arith.addi %242, %245 : vector<14x14xi32>
    %c1_i32 = arith.constant 1 : i32
    %247 = vector.broadcast %c1_i32 : i32 to vector<14x14xi32>
    %248 = arith.cmpi sge, %246, %247 : vector<14x14xi32>
    %c0_i32_86 = arith.constant 0 : i32
    %249 = vector.broadcast %c0_i32_86 : i32 to vector<14x14xi32>
    %250 = arith.addi %242, %249 : vector<14x14xi32>
    %c14_i32 = arith.constant 14 : i32
    %251 = vector.broadcast %c14_i32 : i32 to vector<14x14xi32>
    %252 = arith.cmpi sle, %250, %251 : vector<14x14xi32>
    %253 = arith.andi %248, %252 : vector<14x14xi1>
    %c0_i32_87 = arith.constant 0 : i32
    %254 = vector.broadcast %c0_i32_87 : i32 to vector<14x14xi32>
    %255 = arith.addi %243, %254 : vector<14x14xi32>
    %c1_i32_88 = arith.constant 1 : i32
    %256 = vector.broadcast %c1_i32_88 : i32 to vector<14x14xi32>
    %257 = arith.cmpi sge, %255, %256 : vector<14x14xi32>
    %c0_i32_89 = arith.constant 0 : i32
    %258 = vector.broadcast %c0_i32_89 : i32 to vector<14x14xi32>
    %259 = arith.addi %243, %258 : vector<14x14xi32>
    %c14_i32_90 = arith.constant 14 : i32
    %260 = vector.broadcast %c14_i32_90 : i32 to vector<14x14xi32>
    %261 = arith.cmpi sle, %259, %260 : vector<14x14xi32>
    %262 = arith.andi %257, %261 : vector<14x14xi1>
    %263 = arith.andi %253, %262 : vector<14x14xi1>
    %c0_91 = arith.constant 0 : index
    %264 = memref.load %arg4[%c0_91] : memref<9xf32, #tpu.memory_space<smem>>
    %cst_92 = arith.constant 0.000000e+00 : f32
    %265 = vector.broadcast %264 : f32 to vector<14x14xf32>
    %266 = vector.broadcast %cst_92 : f32 to vector<14x14xf32>
    %267 = arith.select %263, %265, %266 : vector<14x14xi1>, vector<14x14xf32>
    %268 = arith.addf %244, %267 : vector<14x14xf32>
    %c1_i32_93 = arith.constant 1 : i32
    %269 = vector.broadcast %c1_i32_93 : i32 to vector<14x14xi32>
    %270 = arith.addi %243, %269 : vector<14x14xi32>
    %c1_i32_94 = arith.constant 1 : i32
    %271 = vector.broadcast %c1_i32_94 : i32 to vector<14x14xi32>
    %272 = arith.cmpi sge, %270, %271 : vector<14x14xi32>
    %c1_i32_95 = arith.constant 1 : i32
    %273 = vector.broadcast %c1_i32_95 : i32 to vector<14x14xi32>
    %274 = arith.addi %243, %273 : vector<14x14xi32>
    %c14_i32_96 = arith.constant 14 : i32
    %275 = vector.broadcast %c14_i32_96 : i32 to vector<14x14xi32>
    %276 = arith.cmpi sle, %274, %275 : vector<14x14xi32>
    %277 = arith.andi %272, %276 : vector<14x14xi1>
    %278 = arith.andi %253, %277 : vector<14x14xi1>
    %c1_97 = arith.constant 1 : index
    %279 = memref.load %arg4[%c1_97] : memref<9xf32, #tpu.memory_space<smem>>
    %cst_98 = arith.constant 0.000000e+00 : f32
    %280 = vector.broadcast %279 : f32 to vector<14x14xf32>
    %281 = vector.broadcast %cst_98 : f32 to vector<14x14xf32>
    %282 = arith.select %278, %280, %281 : vector<14x14xi1>, vector<14x14xf32>
    %283 = arith.addf %268, %282 : vector<14x14xf32>
    %c2_i32 = arith.constant 2 : i32
    %284 = vector.broadcast %c2_i32 : i32 to vector<14x14xi32>
    %285 = arith.addi %243, %284 : vector<14x14xi32>
    %c1_i32_99 = arith.constant 1 : i32
    %286 = vector.broadcast %c1_i32_99 : i32 to vector<14x14xi32>
    %287 = arith.cmpi sge, %285, %286 : vector<14x14xi32>
    %c2_i32_100 = arith.constant 2 : i32
    %288 = vector.broadcast %c2_i32_100 : i32 to vector<14x14xi32>
    %289 = arith.addi %243, %288 : vector<14x14xi32>
    %c14_i32_101 = arith.constant 14 : i32
    %290 = vector.broadcast %c14_i32_101 : i32 to vector<14x14xi32>
    %291 = arith.cmpi sle, %289, %290 : vector<14x14xi32>
    %292 = arith.andi %287, %291 : vector<14x14xi1>
    %293 = arith.andi %253, %292 : vector<14x14xi1>
    %c2_102 = arith.constant 2 : index
    %294 = memref.load %arg4[%c2_102] : memref<9xf32, #tpu.memory_space<smem>>
    %cst_103 = arith.constant 0.000000e+00 : f32
    %295 = vector.broadcast %294 : f32 to vector<14x14xf32>
    %296 = vector.broadcast %cst_103 : f32 to vector<14x14xf32>
    %297 = arith.select %293, %295, %296 : vector<14x14xi1>, vector<14x14xf32>
    %298 = arith.addf %283, %297 : vector<14x14xf32>
    %c1_i32_104 = arith.constant 1 : i32
    %299 = vector.broadcast %c1_i32_104 : i32 to vector<14x14xi32>
    %300 = arith.addi %242, %299 : vector<14x14xi32>
    %c1_i32_105 = arith.constant 1 : i32
    %301 = vector.broadcast %c1_i32_105 : i32 to vector<14x14xi32>
    %302 = arith.cmpi sge, %300, %301 : vector<14x14xi32>
    %c1_i32_106 = arith.constant 1 : i32
    %303 = vector.broadcast %c1_i32_106 : i32 to vector<14x14xi32>
    %304 = arith.addi %242, %303 : vector<14x14xi32>
    %c14_i32_107 = arith.constant 14 : i32
    %305 = vector.broadcast %c14_i32_107 : i32 to vector<14x14xi32>
    %306 = arith.cmpi sle, %304, %305 : vector<14x14xi32>
    %307 = arith.andi %302, %306 : vector<14x14xi1>
    %c0_i32_108 = arith.constant 0 : i32
    %308 = vector.broadcast %c0_i32_108 : i32 to vector<14x14xi32>
    %309 = arith.addi %243, %308 : vector<14x14xi32>
    %c1_i32_109 = arith.constant 1 : i32
    %310 = vector.broadcast %c1_i32_109 : i32 to vector<14x14xi32>
    %311 = arith.cmpi sge, %309, %310 : vector<14x14xi32>
    %c0_i32_110 = arith.constant 0 : i32
    %312 = vector.broadcast %c0_i32_110 : i32 to vector<14x14xi32>
    %313 = arith.addi %243, %312 : vector<14x14xi32>
    %c14_i32_111 = arith.constant 14 : i32
    %314 = vector.broadcast %c14_i32_111 : i32 to vector<14x14xi32>
    %315 = arith.cmpi sle, %313, %314 : vector<14x14xi32>
    %316 = arith.andi %311, %315 : vector<14x14xi1>
    %317 = arith.andi %307, %316 : vector<14x14xi1>
    %c3_112 = arith.constant 3 : index
    %318 = memref.load %arg4[%c3_112] : memref<9xf32, #tpu.memory_space<smem>>
    %cst_113 = arith.constant 0.000000e+00 : f32
    %319 = vector.broadcast %318 : f32 to vector<14x14xf32>
    %320 = vector.broadcast %cst_113 : f32 to vector<14x14xf32>
    %321 = arith.select %317, %319, %320 : vector<14x14xi1>, vector<14x14xf32>
    %322 = arith.addf %298, %321 : vector<14x14xf32>
    %c1_i32_114 = arith.constant 1 : i32
    %323 = vector.broadcast %c1_i32_114 : i32 to vector<14x14xi32>
    %324 = arith.addi %243, %323 : vector<14x14xi32>
    %c1_i32_115 = arith.constant 1 : i32
    %325 = vector.broadcast %c1_i32_115 : i32 to vector<14x14xi32>
    %326 = arith.cmpi sge, %324, %325 : vector<14x14xi32>
    %c1_i32_116 = arith.constant 1 : i32
    %327 = vector.broadcast %c1_i32_116 : i32 to vector<14x14xi32>
    %328 = arith.addi %243, %327 : vector<14x14xi32>
    %c14_i32_117 = arith.constant 14 : i32
    %329 = vector.broadcast %c14_i32_117 : i32 to vector<14x14xi32>
    %330 = arith.cmpi sle, %328, %329 : vector<14x14xi32>
    %331 = arith.andi %326, %330 : vector<14x14xi1>
    %332 = arith.andi %307, %331 : vector<14x14xi1>
    %c4_118 = arith.constant 4 : index
    %333 = memref.load %arg4[%c4_118] : memref<9xf32, #tpu.memory_space<smem>>
    %cst_119 = arith.constant 0.000000e+00 : f32
    %334 = vector.broadcast %333 : f32 to vector<14x14xf32>
    %335 = vector.broadcast %cst_119 : f32 to vector<14x14xf32>
    %336 = arith.select %332, %334, %335 : vector<14x14xi1>, vector<14x14xf32>
    %337 = arith.addf %322, %336 : vector<14x14xf32>
    %c2_i32_120 = arith.constant 2 : i32
    %338 = vector.broadcast %c2_i32_120 : i32 to vector<14x14xi32>
    %339 = arith.addi %243, %338 : vector<14x14xi32>
    %c1_i32_121 = arith.constant 1 : i32
    %340 = vector.broadcast %c1_i32_121 : i32 to vector<14x14xi32>
    %341 = arith.cmpi sge, %339, %340 : vector<14x14xi32>
    %c2_i32_122 = arith.constant 2 : i32
    %342 = vector.broadcast %c2_i32_122 : i32 to vector<14x14xi32>
    %343 = arith.addi %243, %342 : vector<14x14xi32>
    %c14_i32_123 = arith.constant 14 : i32
    %344 = vector.broadcast %c14_i32_123 : i32 to vector<14x14xi32>
    %345 = arith.cmpi sle, %343, %344 : vector<14x14xi32>
    %346 = arith.andi %341, %345 : vector<14x14xi1>
    %347 = arith.andi %307, %346 : vector<14x14xi1>
    %c5_124 = arith.constant 5 : index
    %348 = memref.load %arg4[%c5_124] : memref<9xf32, #tpu.memory_space<smem>>
    %cst_125 = arith.constant 0.000000e+00 : f32
    %349 = vector.broadcast %348 : f32 to vector<14x14xf32>
    %350 = vector.broadcast %cst_125 : f32 to vector<14x14xf32>
    %351 = arith.select %347, %349, %350 : vector<14x14xi1>, vector<14x14xf32>
    %352 = arith.addf %337, %351 : vector<14x14xf32>
    %c2_i32_126 = arith.constant 2 : i32
    %353 = vector.broadcast %c2_i32_126 : i32 to vector<14x14xi32>
    %354 = arith.addi %242, %353 : vector<14x14xi32>
    %c1_i32_127 = arith.constant 1 : i32
    %355 = vector.broadcast %c1_i32_127 : i32 to vector<14x14xi32>
    %356 = arith.cmpi sge, %354, %355 : vector<14x14xi32>
    %c2_i32_128 = arith.constant 2 : i32
    %357 = vector.broadcast %c2_i32_128 : i32 to vector<14x14xi32>
    %358 = arith.addi %242, %357 : vector<14x14xi32>
    %c14_i32_129 = arith.constant 14 : i32
    %359 = vector.broadcast %c14_i32_129 : i32 to vector<14x14xi32>
    %360 = arith.cmpi sle, %358, %359 : vector<14x14xi32>
    %361 = arith.andi %356, %360 : vector<14x14xi1>
    %c0_i32_130 = arith.constant 0 : i32
    %362 = vector.broadcast %c0_i32_130 : i32 to vector<14x14xi32>
    %363 = arith.addi %243, %362 : vector<14x14xi32>
    %c1_i32_131 = arith.constant 1 : i32
    %364 = vector.broadcast %c1_i32_131 : i32 to vector<14x14xi32>
    %365 = arith.cmpi sge, %363, %364 : vector<14x14xi32>
    %c0_i32_132 = arith.constant 0 : i32
    %366 = vector.broadcast %c0_i32_132 : i32 to vector<14x14xi32>
    %367 = arith.addi %243, %366 : vector<14x14xi32>
    %c14_i32_133 = arith.constant 14 : i32
    %368 = vector.broadcast %c14_i32_133 : i32 to vector<14x14xi32>
    %369 = arith.cmpi sle, %367, %368 : vector<14x14xi32>
    %370 = arith.andi %365, %369 : vector<14x14xi1>
    %371 = arith.andi %361, %370 : vector<14x14xi1>
    %c6_134 = arith.constant 6 : index
    %372 = memref.load %arg4[%c6_134] : memref<9xf32, #tpu.memory_space<smem>>
    %cst_135 = arith.constant 0.000000e+00 : f32
    %373 = vector.broadcast %372 : f32 to vector<14x14xf32>
    %374 = vector.broadcast %cst_135 : f32 to vector<14x14xf32>
    %375 = arith.select %371, %373, %374 : vector<14x14xi1>, vector<14x14xf32>
    %376 = arith.addf %352, %375 : vector<14x14xf32>
    %c1_i32_136 = arith.constant 1 : i32
    %377 = vector.broadcast %c1_i32_136 : i32 to vector<14x14xi32>
    %378 = arith.addi %243, %377 : vector<14x14xi32>
    %c1_i32_137 = arith.constant 1 : i32
    %379 = vector.broadcast %c1_i32_137 : i32 to vector<14x14xi32>
    %380 = arith.cmpi sge, %378, %379 : vector<14x14xi32>
    %c1_i32_138 = arith.constant 1 : i32
    %381 = vector.broadcast %c1_i32_138 : i32 to vector<14x14xi32>
    %382 = arith.addi %243, %381 : vector<14x14xi32>
    %c14_i32_139 = arith.constant 14 : i32
    %383 = vector.broadcast %c14_i32_139 : i32 to vector<14x14xi32>
    %384 = arith.cmpi sle, %382, %383 : vector<14x14xi32>
    %385 = arith.andi %380, %384 : vector<14x14xi1>
    %386 = arith.andi %361, %385 : vector<14x14xi1>
    %c7_140 = arith.constant 7 : index
    %387 = memref.load %arg4[%c7_140] : memref<9xf32, #tpu.memory_space<smem>>
    %cst_141 = arith.constant 0.000000e+00 : f32
    %388 = vector.broadcast %387 : f32 to vector<14x14xf32>
    %389 = vector.broadcast %cst_141 : f32 to vector<14x14xf32>
    %390 = arith.select %386, %388, %389 : vector<14x14xi1>, vector<14x14xf32>
    %391 = arith.addf %376, %390 : vector<14x14xf32>
    %c2_i32_142 = arith.constant 2 : i32
    %392 = vector.broadcast %c2_i32_142 : i32 to vector<14x14xi32>
    %393 = arith.addi %243, %392 : vector<14x14xi32>
    %c1_i32_143 = arith.constant 1 : i32
    %394 = vector.broadcast %c1_i32_143 : i32 to vector<14x14xi32>
    %395 = arith.cmpi sge, %393, %394 : vector<14x14xi32>
    %c2_i32_144 = arith.constant 2 : i32
    %396 = vector.broadcast %c2_i32_144 : i32 to vector<14x14xi32>
    %397 = arith.addi %243, %396 : vector<14x14xi32>
    %c14_i32_145 = arith.constant 14 : i32
    %398 = vector.broadcast %c14_i32_145 : i32 to vector<14x14xi32>
    %399 = arith.cmpi sle, %397, %398 : vector<14x14xi32>
    %400 = arith.andi %395, %399 : vector<14x14xi1>
    %401 = arith.andi %361, %400 : vector<14x14xi1>
    %c8_146 = arith.constant 8 : index
    %402 = memref.load %arg4[%c8_146] : memref<9xf32, #tpu.memory_space<smem>>
    %cst_147 = arith.constant 0.000000e+00 : f32
    %403 = vector.broadcast %402 : f32 to vector<14x14xf32>
    %404 = vector.broadcast %cst_147 : f32 to vector<14x14xf32>
    %405 = arith.select %401, %403, %404 : vector<14x14xi1>, vector<14x14xf32>
    %406 = arith.addf %391, %405 : vector<14x14xf32>
    %407 = vector.broadcast %185 : f32 to vector<14x14xf32>
    %408 = arith.mulf %407, %406 : vector<14x14xf32>
    %c0_148 = arith.constant 0 : index
    %409 = memref.load %arg5[%c0_148] : memref<1xf32, #tpu.memory_space<smem>>
    %410 = vector.broadcast %409 : f32 to vector<14x14xf32>
    %411 = arith.addf %408, %410 : vector<14x14xf32>
    %412 = vector.broadcast %182 : f32 to vector<2x14x14xf32>
    %413 = arith.mulf %412, %241 : vector<2x14x14xf32>
    %414 = vector.shape_cast %411 : vector<14x14xf32> to vector<1x14x14xf32>
    %415 = vector.broadcast %414 : vector<1x14x14xf32> to vector<2x14x14xf32>
    %416 = arith.addf %413, %415 : vector<2x14x14xf32>
    %c0_149 = arith.constant 0 : index
    %c0_150 = arith.constant 0 : index
    %c0_151 = arith.constant 0 : index
    %417 = vector.load %arg6[%c0_149, %c0_150, %c0_151] : memref<2x14x14xf32, #tpu.memory_space<vmem>>, vector<2x14x14xf32>
    tpu.vector_store %arg6[%c0_149, %c0_150, %c0_151], %416 {strides = array<i32>} : memref<2x14x14xf32, #tpu.memory_space<vmem>>, vector<2x14x14xf32>,
    return
  }
}

</mosaic_0001>

<llo_original>
// kernel: fwd.1
$region0: #{fwd.1}
  #allocation0 [shape = 'u32[]', space=smem, size = 0x4, offset = 0x4, fixed_abs, tag = 'smem constant byte address 0x4 - core index']
  #allocation1 [shape = 'u32[144,128]{1,0:T(1,128)}', space=vmem, size = 0x12000, scoped, tag = 'internal scratch']
  #allocation2 [shape = 'f32[2,3,18,18]{3,2,1,0:T(8,128)}', space=vmem, size = 0x12000, scoped, tag = 'scratch operand']
  #allocation3 [shape = 'f32[2,16,16]{2,1,0:T(8,128)}', space=vmem, size = 0x4000, scoped, tag = 'scratch operand']
  #allocation4 [shape = 'f32[1]{0:T(128)S(6)}', space=smem, size = 0x200, scoped, tag = 'scoped memory for fwd.1']
  #allocation5 [shape = 'f32[1]{0:T(128)S(6)}', space=smem, size = 0x200, scoped, tag = 'scoped memory for fwd.1']
  #allocation6 [shape = 'f32[1]{0:T(128)S(6)}', space=smem, size = 0x200, scoped, tag = 'scoped memory for fwd.1']
  %s0 = inlined_call_operand.hbm [shape: f32[2,3,16,16], index: 0, kind: input, shape index: {}]
  %s1 = inlined_call_operand.vmem [shape: f32[27], index: 1, kind: input, shape index: {}]
  %s2 = inlined_call_operand.<no memory space> [shape: f32[1], index: 2, kind: input, shape index: {}]
  %s3 = inlined_call_operand.<no memory space> [shape: f32[1], index: 3, kind: input, shape index: {}]
  %s4 = inlined_call_operand.vmem [shape: f32[9], index: 4, kind: input, shape index: {}]
  %s5 = inlined_call_operand.<no memory space> [shape: f32[1], index: 5, kind: input, shape index: {}]
  %s6 = inlined_call_operand.vmem [shape: f32[2,14,14], index: 6, kind: output, shape index: {}]
  %s7 = sld [smem:[#allocation0]]
  $region46: #{fwd.1} parent=0
    _
  %s9 = ssub.s32 1, %s7
  %s10 = scalar_select 0, %s9, %s7
  %11 = sst [smem:[#allocation4]] %s2
  %12 = sst [smem:[#allocation5]] %s3
  %13 = sst [smem:[#allocation6]] %s5
  $region1: #{fwd.1} parent=0
    #allocation7 [shape = 'u8[49152]{0}', space=vmem, size = 0xc000, scoped, tag = 'input window, operand 0, single buffered']
    #allocation8 [shape = 's32[1]{0}', space=sflag, size = 0x4, scoped, tag = 'scoped memory for fwd.1']
    #allocation9 [shape = 's32[1]{0}', space=sflag, size = 0x4, scoped, tag = 'scoped memory for fwd.1']
    #allocation10 [shape = 'u8[512]{0}', space=smem, size = 0x200, scoped, tag = 'input window, operand 1, single buffered']
    #allocation11 [shape = 'u8[512]{0}', space=smem, size = 0x200, scoped, tag = 'input window, operand 4, single buffered']
    #allocation12 [shape = 's32[1]{0}', space=sflag, size = 0x4, scoped, tag = 'scoped memory for fwd.1']
    %14 = vsyncpa [#allocation8], 0
    %15 = vsyncpa [#allocation9], 0
    %16 = vsyncpa [#allocation12], 0
    // Predicated region
    $region2: #{fwd.1} parent=1 // pred_check
      _
    $region3: #{fwd.1} parent=1 // pred_check_branch
      %18 = sbr.rel (0) target = $region5
    $region4: #{fwd.1} parent=1 // pred_region
      %s20 = ssub.s32 1536, 1536
      %21 = vsyncadd [#allocation8], %s20
      %s22 = sshll.u32 [#allocation7], 4
      %s23 = int_to_ptr.vmem [resolvable:$true] %s22
      %28 = dma.hbm_to_vmem [thread:$0]  %s0, 1536, %s23, [#allocation8], 128, 128, 8
    $region5: #{fwd.1} parent=1 // pred_fallthru
      _
    // Predicated region
    $region6: #{fwd.1} parent=1 // pred_check
      _
    $region7: #{fwd.1} parent=1 // pred_check_branch
      %30 = sbr.rel (0) target = $region9
    $region8: #{fwd.1} parent=1 // pred_region
      %s32 = ssub.s32 16, 16
      %33 = vsyncadd [#allocation9], %s32
      %s35 = sshll.u32 %s1, 4
      %s36 = int_to_ptr.vmem [resolvable:$true] %s35
      %38 = dma.vmem_to_smem %s36, 16, [#allocation10], [#allocation9]
    $region9: #{fwd.1} parent=1 // pred_fallthru
      _
    // Predicated region
    $region10: #{fwd.1} parent=1 // pred_check
      _
    $region11: #{fwd.1} parent=1 // pred_check_branch
      %40 = sbr.rel (0) target = $region13
    $region12: #{fwd.1} parent=1 // pred_region
      _
    $region13: #{fwd.1} parent=1 // pred_fallthru
      _
    // Predicated region
    $region14: #{fwd.1} parent=1 // pred_check
      _
    $region15: #{fwd.1} parent=1 // pred_check_branch
      %42 = sbr.rel (0) target = $region17
    $region16: #{fwd.1} parent=1 // pred_region
      _
    $region17: #{fwd.1} parent=1 // pred_fallthru
      _
    // Predicated region
    $region18: #{fwd.1} parent=1 // pred_check
      _
    $region19: #{fwd.1} parent=1 // pred_check_branch
      %44 = sbr.rel (0) target = $region21
    $region20: #{fwd.1} parent=1 // pred_region
      %s46 = ssub.s32 16, 16
      %47 = vsyncadd [#allocation12], %s46
      %s49 = sshll.u32 %s4, 4
      %s50 = int_to_ptr.vmem [resolvable:$true] %s49
      %52 = dma.vmem_to_smem %s50, 16, [#allocation11], [#allocation12]
    $region21: #{fwd.1} parent=1 // pred_fallthru
      _
    // Predicated region
    $region22: #{fwd.1} parent=1 // pred_check
      _
    $region23: #{fwd.1} parent=1 // pred_check_branch
      %54 = sbr.rel (0) target = $region25
    $region24: #{fwd.1} parent=1 // pred_region
      _
    $region25: #{fwd.1} parent=1 // pred_fallthru
      _
    // Predicated region
    $region26: #{fwd.1} parent=1 // pred_check
      _
    $region27: #{fwd.1} parent=1 // pred_check_branch
      %56 = sbr.rel (0) target = $region29
    $region28: #{fwd.1} parent=1 // pred_region
      %57 = dma.done [#allocation8], 1536
    $region29: #{fwd.1} parent=1 // pred_fallthru
      _
    // Predicated region
    $region30: #{fwd.1} parent=1 // pred_check
      _
    $region31: #{fwd.1} parent=1 // pred_check_branch
      %59 = sbr.rel (0) target = $region33
    $region32: #{fwd.1} parent=1 // pred_region
      %60 = dma.done [#allocation9], 16
    $region33: #{fwd.1} parent=1 // pred_fallthru
      _
    // Predicated region
    $region34: #{fwd.1} parent=1 // pred_check
      _
    $region35: #{fwd.1} parent=1 // pred_check_branch
      %62 = sbr.rel (0) target = $region37
    $region36: #{fwd.1} parent=1 // pred_region
      %63 = dma.done [#allocation12], 16
    $region37: #{fwd.1} parent=1 // pred_fallthru
      _
    %64 = sfence
    %vm65 = vcmask 139264
    %66 = vst.msk [vmem:[#allocation2] sm:$0x1] %vm65, 0.0
    %67 = vst.msk [vmem:[#allocation2 + $0x18] sm:$0x1] %vm65, 0.0
    %68 = vst.msk [vmem:[#allocation2 + $0x30] sm:$0x1] %vm65, 0.0
    %69 = vst.msk [vmem:[#allocation2 + $0x48] sm:$0x1] %vm65, 0.0
    %70 = vst.msk [vmem:[#allocation2 + $0x60] sm:$0x1] %vm65, 0.0
    %71 = vst.msk [vmem:[#allocation2 + $0x78] sm:$0x1] %vm65, 0.0
    %72 = vst.msk [vmem:[#allocation2 + $0x11] sm:$0x1] %vm65, 0.0
    %73 = vst.msk [vmem:[#allocation2 + $0x29] sm:$0x1] %vm65, 0.0
    %74 = vst.msk [vmem:[#allocation2 + $0x41] sm:$0x1] %vm65, 0.0
    %75 = vst.msk [vmem:[#allocation2 + $0x59] sm:$0x1] %vm65, 0.0
    %76 = vst.msk [vmem:[#allocation2 + $0x71] sm:$0x1] %vm65, 0.0
    %77 = vst.msk [vmem:[#allocation2 + $0x89] sm:$0x1] %vm65, 0.0
    %vm78 = vcmask 7168
    %79 = vst.msk [vmem:[#allocation2 + $0x1] sm:$0xff] %vm78, 0.0
    %80 = vst.msk [vmem:[#allocation2 + $0x9] sm:$0xff] %vm78, 0.0
    %81 = vst.msk [vmem:[#allocation2 + $0x19] sm:$0xff] %vm78, 0.0
    %82 = vst.msk [vmem:[#allocation2 + $0x21] sm:$0xff] %vm78, 0.0
    %83 = vst.msk [vmem:[#allocation2 + $0x31] sm:$0xff] %vm78, 0.0
    %84 = vst.msk [vmem:[#allocation2 + $0x39] sm:$0xff] %vm78, 0.0
    %85 = vst.msk [vmem:[#allocation2 + $0x49] sm:$0xff] %vm78, 0.0
    %86 = vst.msk [vmem:[#allocation2 + $0x51] sm:$0xff] %vm78, 0.0
    %87 = vst.msk [vmem:[#allocation2 + $0x61] sm:$0xff] %vm78, 0.0
    %88 = vst.msk [vmem:[#allocation2 + $0x69] sm:$0xff] %vm78, 0.0
    %89 = vst.msk [vmem:[#allocation2 + $0x79] sm:$0xff] %vm78, 0.0
    %90 = vst.msk [vmem:[#allocation2 + $0x81] sm:$0xff] %vm78, 0.0
    %vm91 = vcmask 146568
    %92 = vst.msk [vmem:[#allocation2 + $0x1] sm:$0xff] %vm91, 0.0
    %93 = vst.msk [vmem:[#allocation2 + $0x9] sm:$0xff] %vm91, 0.0
    %94 = vst.msk [vmem:[#allocation2 + $0x19] sm:$0xff] %vm91, 0.0
    %95 = vst.msk [vmem:[#allocation2 + $0x21] sm:$0xff] %vm91, 0.0
    %96 = vst.msk [vmem:[#allocation2 + $0x31] sm:$0xff] %vm91, 0.0
    %97 = vst.msk [vmem:[#allocation2 + $0x39] sm:$0xff] %vm91, 0.0
    %98 = vst.msk [vmem:[#allocation2 + $0x49] sm:$0xff] %vm91, 0.0
    %99 = vst.msk [vmem:[#allocation2 + $0x51] sm:$0xff] %vm91, 0.0
    %100 = vst.msk [vmem:[#allocation2 + $0x61] sm:$0xff] %vm91, 0.0
    %101 = vst.msk [vmem:[#allocation2 + $0x69] sm:$0xff] %vm91, 0.0
    %102 = vst.msk [vmem:[#allocation2 + $0x79] sm:$0xff] %vm91, 0.0
    %103 = vst.msk [vmem:[#allocation2 + $0x81] sm:$0xff] %vm91, 0.0
    %v104 = vld [vmem:[#allocation7] sm:$0xff]
    %v105 = vld [vmem:[#allocation7 + $0x8] sm:$0xff]
    %v106 = vld [vmem:[#allocation7 + $0x10] sm:$0xff]
    %v107 = vld [vmem:[#allocation7 + $0x18] sm:$0xff]
    %v108 = vld [vmem:[#allocation7 + $0x20] sm:$0xff]
    %v109 = vld [vmem:[#allocation7 + $0x28] sm:$0xff]
    %v110 = vld [vmem:[#allocation7 + $0x30] sm:$0xff]
    %v111 = vld [vmem:[#allocation7 + $0x38] sm:$0xff]
    %v112 = vld [vmem:[#allocation7 + $0x40] sm:$0xff]
    %v113 = vld [vmem:[#allocation7 + $0x48] sm:$0xff]
    %v114 = vld [vmem:[#allocation7 + $0x50] sm:$0xff]
    %v115 = vld [vmem:[#allocation7 + $0x58] sm:$0xff]
    %128 = vrot.lane.b32.xlu0 %v104, 1
    %v129 = vpop.permute.xlu0 %128
    %130 = vrot.lane.b32.xlu0 %v105, 1
    %v131 = vpop.permute.xlu0 %130
    %132 = vrot.lane.b32.xlu0 %v106, 1
    %v133 = vpop.permute.xlu0 %132
    %134 = vrot.lane.b32.xlu0 %v107, 1
    %v135 = vpop.permute.xlu0 %134
    %136 = vrot.lane.b32.xlu0 %v108, 1
    %v137 = vpop.permute.xlu0 %136
    %138 = vrot.lane.b32.xlu0 %v109, 1
    %v139 = vpop.permute.xlu0 %138
    %140 = vrot.lane.b32.xlu0 %v110, 1
    %v141 = vpop.permute.xlu0 %140
    %142 = vrot.lane.b32.xlu0 %v111, 1
    %v143 = vpop.permute.xlu0 %142
    %144 = vrot.lane.b32.xlu0 %v112, 1
    %v145 = vpop.permute.xlu0 %144
    %146 = vrot.lane.b32.xlu0 %v113, 1
    %v147 = vpop.permute.xlu0 %146
    %148 = vrot.lane.b32.xlu0 %v114, 1
    %v149 = vpop.permute.xlu0 %148
    %150 = vrot.lane.b32.xlu0 %v115, 1
    %v151 = vpop.permute.xlu0 %150
    %vm164 = vcmask 138248
    %165 = vst.msk [vmem:[#allocation2 + $0x1] sm:$0xff] %vm164, %v129
    %166 = vst.msk [vmem:[#allocation2 + $0x9] sm:$0xff] %vm164, %v131
    %167 = vst.msk [vmem:[#allocation2 + $0x19] sm:$0xff] %vm164, %v133
    %168 = vst.msk [vmem:[#allocation2 + $0x21] sm:$0xff] %vm164, %v135
    %169 = vst.msk [vmem:[#allocation2 + $0x31] sm:$0xff] %vm164, %v137
    %170 = vst.msk [vmem:[#allocation2 + $0x39] sm:$0xff] %vm164, %v139
    %171 = vst.msk [vmem:[#allocation2 + $0x49] sm:$0xff] %vm164, %v141
    %172 = vst.msk [vmem:[#allocation2 + $0x51] sm:$0xff] %vm164, %v143
    %173 = vst.msk [vmem:[#allocation2 + $0x61] sm:$0xff] %vm164, %v145
    %174 = vst.msk [vmem:[#allocation2 + $0x69] sm:$0xff] %vm164, %v147
    %175 = vst.msk [vmem:[#allocation2 + $0x79] sm:$0xff] %vm164, %v149
    %176 = vst.msk [vmem:[#allocation2 + $0x81] sm:$0xff] %vm164, %v151
    %v177 = vld [vmem:[#allocation2] sm:$0xff]
    %v178 = vld [vmem:[#allocation2 + $0x8] sm:$0xff]
    %v179 = vld [vmem:[#allocation2 + $0x10] sm:$0x3]
    %v180 = vld [vmem:[#allocation2 + $0x48] sm:$0xff]
    %v181 = vld [vmem:[#allocation2 + $0x50] sm:$0xff]
    %v182 = vld [vmem:[#allocation2 + $0x58] sm:$0x3]
    %s183 = sld [smem:[#allocation10]]
    %v184 = vstv %s183
    %v185 = vmul.f32 %v177, %v184
    %v186 = vmul.f32 %v178, %v184
    %v187 = vmul.f32 %v180, %v184
    %v188 = vmul.f32 %v181, %v184
    %v189 = vadd.f32 %v185, 0.0
    %v190 = vadd.f32 %v186, 0.0
    %v191 = vadd.f32 %v187, 0.0
    %v192 = vadd.f32 %v188, 0.0
    %s193 = sld [smem:[#allocation10 + $0x1]]
    %v194 = vstv %s193
    %v195 = vmul.f32 %v177, %v194
    %v196 = vmul.f32 %v178, %v194
    %v197 = vmul.f32 %v180, %v194
    %v198 = vmul.f32 %v181, %v194
    %203 = vrot.lane.b32.xlu0 %v195, 126
    %v204 = vpop.permute.xlu0 %203
    %205 = vrot.lane.b32.xlu0 %v196, 126
    %v206 = vpop.permute.xlu0 %205
    %207 = vrot.lane.b32.xlu0 %v197, 126
    %v208 = vpop.permute.xlu0 %207
    %209 = vrot.lane.b32.xlu0 %v198, 126
    %v210 = vpop.permute.xlu0 %209
    %v215 = vadd.f32 %v189, %v204
    %v216 = vadd.f32 %v190, %v206
    %v217 = vadd.f32 %v191, %v208
    %v218 = vadd.f32 %v192, %v210
    %s219 = sld [smem:[#allocation10 + $0x2]]
    %v220 = vstv %s219
    %v221 = vmul.f32 %v177, %v220
    %v222 = vmul.f32 %v178, %v220
    %v223 = vmul.f32 %v180, %v220
    %v224 = vmul.f32 %v181, %v220
    %229 = vrot.lane.b32.xlu0 %v221, 124
    %v230 = vpop.permute.xlu0 %229
    %231 = vrot.lane.b32.xlu0 %v222, 124
    %v232 = vpop.permute.xlu0 %231
    %233 = vrot.lane.b32.xlu0 %v223, 124
    %v234 = vpop.permute.xlu0 %233
    %235 = vrot.lane.b32.xlu0 %v224, 124
    %v236 = vpop.permute.xlu0 %235
    %v241 = vadd.f32 %v215, %v230
    %v242 = vadd.f32 %v216, %v232
    %v243 = vadd.f32 %v217, %v234
    %v244 = vadd.f32 %v218, %v236
    %s245 = sld [smem:[#allocation10 + $0x3]]
    %v246 = vstv %s245
    %v247 = vmul.f32 %v177, %v246
    %v248 = vmul.f32 %v178, %v246
    %v249 = vmul.f32 %v180, %v246
    %v250 = vmul.f32 %v181, %v246
    %vm255 = vcmask 1045504
    %v256 = vrot.slane %v247, 2
    %v257 = vrot.slane %v248, 2
    %v258 = vsel %vm255, %v256, %v257
    %v259 = vrot.slane %v249, 2
    %v260 = vrot.slane %v250, 2
    %v261 = vsel %vm255, %v259, %v260
    %v266 = vadd.f32 %v241, %v258
    %v267 = vadd.f32 %v242, %v257
    %v268 = vadd.f32 %v243, %v261
    %v269 = vadd.f32 %v244, %v260
    %s270 = sld [smem:[#allocation10 + $0x4]]
    %v271 = vstv %s270
    %v272 = vmul.f32 %v177, %v271
    %v273 = vmul.f32 %v178, %v271
    %v274 = vmul.f32 %v180, %v271
    %v275 = vmul.f32 %v181, %v271
    %v280 = vrot.slane %v272, 2
    %v281 = vrot.slane %v273, 2
    %v282 = vsel %vm255, %v280, %v281
    %v283 = vrot.slane %v274, 2
    %v284 = vrot.slane %v275, 2
    %v285 = vsel %vm255, %v283, %v284
    %286 = vrot.lane.b32.xlu0 %v282, 126
    %v287 = vpop.permute.xlu0 %286
    %288 = vrot.lane.b32.xlu0 %v281, 126
    %v289 = vpop.permute.xlu0 %288
    %290 = vrot.lane.b32.xlu0 %v285, 126
    %v291 = vpop.permute.xlu0 %290
    %292 = vrot.lane.b32.xlu0 %v284, 126
    %v293 = vpop.permute.xlu0 %292
    %v298 = vadd.f32 %v266, %v287
    %v299 = vadd.f32 %v267, %v289
    %v300 = vadd.f32 %v268, %v291
    %v301 = vadd.f32 %v269, %v293
    %s302 = sld [smem:[#allocation10 + $0x5]]
    %v303 = vstv %s302
    %v304 = vmul.f32 %v177, %v303
    %v305 = vmul.f32 %v178, %v303
    %v306 = vmul.f32 %v180, %v303
    %v307 = vmul.f32 %v181, %v303
    %v312 = vrot.slane %v304, 2
    %v313 = vrot.slane %v305, 2
    %v314 = vsel %vm255, %v312, %v313
    %v315 = vrot.slane %v306, 2
    %v316 = vrot.slane %v307, 2
    %v317 = vsel %vm255, %v315, %v316
    %318 = vrot.lane.b32.xlu0 %v314, 124
    %v319 = vpop.permute.xlu0 %318
    %320 = vrot.lane.b32.xlu0 %v313, 124
    %v321 = vpop.permute.xlu0 %320
    %322 = vrot.lane.b32.xlu0 %v317, 124
    %v323 = vpop.permute.xlu0 %322
    %324 = vrot.lane.b32.xlu0 %v316, 124
    %v325 = vpop.permute.xlu0 %324
    %v330 = vadd.f32 %v298, %v319
    %v331 = vadd.f32 %v299, %v321
    %v332 = vadd.f32 %v300, %v323
    %v333 = vadd.f32 %v301, %v325
    %s334 = sld [smem:[#allocation10 + $0x6]]
    %v335 = vstv %s334
    %v336 = vmul.f32 %v177, %v335
    %v337 = vmul.f32 %v178, %v335
    %v338 = vmul.f32 %v179, %v335
    %v339 = vmul.f32 %v180, %v335
    %v340 = vmul.f32 %v181, %v335
    %v341 = vmul.f32 %v182, %v335
    %vm348 = vcmask 1043456
    %v349 = vrot.slane %v336, 4
    %v350 = vrot.slane %v337, 4
    %v351 = vsel %vm348, %v349, %v350
    %v352 = vrot.slane %v338, 4
    %v353 = vsel %vm348, %v350, %v352
    %v354 = vrot.slane %v339, 4
    %v355 = vrot.slane %v340, 4
    %v356 = vsel %vm348, %v354, %v355
    %v357 = vrot.slane %v341, 4
    %v358 = vsel %vm348, %v355, %v357
    %v363 = vadd.f32 %v330, %v351
    %v364 = vadd.f32 %v331, %v353
    %v365 = vadd.f32 %v332, %v356
    %v366 = vadd.f32 %v333, %v358
    %s367 = sld [smem:[#allocation10 + $0x7]]
    %v368 = vstv %s367
    %v369 = vmul.f32 %v177, %v368
    %v370 = vmul.f32 %v178, %v368
    %v371 = vmul.f32 %v179, %v368
    %v372 = vmul.f32 %v180, %v368
    %v373 = vmul.f32 %v181, %v368
    %v374 = vmul.f32 %v182, %v368
    %v381 = vrot.slane %v369, 4
    %v382 = vrot.slane %v370, 4
    %v383 = vsel %vm348, %v381, %v382
    %v384 = vrot.slane %v371, 4
    %v385 = vsel %vm348, %v382, %v384
    %v386 = vrot.slane %v372, 4
    %v387 = vrot.slane %v373, 4
    %v388 = vsel %vm348, %v386, %v387
    %v389 = vrot.slane %v374, 4
    %v390 = vsel %vm348, %v387, %v389
    %391 = vrot.lane.b32.xlu0 %v383, 126
    %v392 = vpop.permute.xlu0 %391
    %393 = vrot.lane.b32.xlu0 %v385, 126
    %v394 = vpop.permute.xlu0 %393
    %395 = vrot.lane.b32.xlu0 %v388, 126
    %v396 = vpop.permute.xlu0 %395
    %397 = vrot.lane.b32.xlu0 %v390, 126
    %v398 = vpop.permute.xlu0 %397
    %v403 = vadd.f32 %v363, %v392
    %v404 = vadd.f32 %v364, %v394
    %v405 = vadd.f32 %v365, %v396
    %v406 = vadd.f32 %v366, %v398
    %s407 = sld [smem:[#allocation10 + $0x8]]
    %v408 = vstv %s407
    %v409 = vmul.f32 %v177, %v408
    %v410 = vmul.f32 %v178, %v408
    %v411 = vmul.f32 %v179, %v408
    %v412 = vmul.f32 %v180, %v408
    %v413 = vmul.f32 %v181, %v408
    %v414 = vmul.f32 %v182, %v408
    %v421 = vrot.slane %v409, 4
    %v422 = vrot.slane %v410, 4
    %v423 = vsel %vm348, %v421, %v422
    %v424 = vrot.slane %v411, 4
    %v425 = vsel %vm348, %v422, %v424
    %v426 = vrot.slane %v412, 4
    %v427 = vrot.slane %v413, 4
    %v428 = vsel %vm348, %v426, %v427
    %v429 = vrot.slane %v414, 4
    %v430 = vsel %vm348, %v427, %v429
    %431 = vrot.lane.b32.xlu0 %v423, 124
    %v432 = vpop.permute.xlu0 %431
    %433 = vrot.lane.b32.xlu0 %v425, 124
    %v434 = vpop.permute.xlu0 %433
    %435 = vrot.lane.b32.xlu0 %v428, 124
    %v436 = vpop.permute.xlu0 %435
    %437 = vrot.lane.b32.xlu0 %v430, 124
    %v438 = vpop.permute.xlu0 %437
    %v443 = vadd.f32 %v403, %v432
    %v444 = vadd.f32 %v404, %v434
    %v445 = vadd.f32 %v405, %v436
    %v446 = vadd.f32 %v406, %v438
    %s447 = scalar_lea.vmem [#allocation2], 24
    %v448 = vld [vmem:[%s447] sm:$0xff]
    %v449 = vld [vmem:[%s447 + $0x8] sm:$0xff]
    %v450 = vld [vmem:[%s447 + $0x10] sm:$0x3]
    %v451 = vld [vmem:[%s447 + $0x48] sm:$0xff]
    %v452 = vld [vmem:[%s447 + $0x50] sm:$0xff]
    %v453 = vld [vmem:[%s447 + $0x58] sm:$0x3]
    %s454 = sld [smem:[#allocation10 + $0x9]]
    %v455 = vstv %s454
    %v456 = vmul.f32 %v448, %v455
    %v457 = vmul.f32 %v449, %v455
    %v458 = vmul.f32 %v451, %v455
    %v459 = vmul.f32 %v452, %v455
    %v460 = vadd.f32 %v443, %v456
    %v461 = vadd.f32 %v444, %v457
    %v462 = vadd.f32 %v445, %v458
    %v463 = vadd.f32 %v446, %v459
    %s464 = sld [smem:[#allocation10 + $0xa]]
    %v465 = vstv %s464
    %v466 = vmul.f32 %v448, %v465
    %v467 = vmul.f32 %v449, %v465
    %v468 = vmul.f32 %v451, %v465
    %v469 = vmul.f32 %v452, %v465
    %474 = vrot.lane.b32.xlu0 %v466, 126
    %v475 = vpop.permute.xlu0 %474
    %476 = vrot.lane.b32.xlu0 %v467, 126
    %v477 = vpop.permute.xlu0 %476
    %478 = vrot.lane.b32.xlu0 %v468, 126
    %v479 = vpop.permute.xlu0 %478
    %480 = vrot.lane.b32.xlu0 %v469, 126
    %v481 = vpop.permute.xlu0 %480
    %v486 = vadd.f32 %v460, %v475
    %v487 = vadd.f32 %v461, %v477
    %v488 = vadd.f32 %v462, %v479
    %v489 = vadd.f32 %v463, %v481
    %s490 = sld [smem:[#allocation10 + $0xb]]
    %v491 = vstv %s490
    %v492 = vmul.f32 %v448, %v491
    %v493 = vmul.f32 %v449, %v491
    %v494 = vmul.f32 %v451, %v491
    %v495 = vmul.f32 %v452, %v491
    %500 = vrot.lane.b32.xlu0 %v492, 124
    %v501 = vpop.permute.xlu0 %500
    %502 = vrot.lane.b32.xlu0 %v493, 124
    %v503 = vpop.permute.xlu0 %502
    %504 = vrot.lane.b32.xlu0 %v494, 124
    %v505 = vpop.permute.xlu0 %504
    %506 = vrot.lane.b32.xlu0 %v495, 124
    %v507 = vpop.permute.xlu0 %506
    %v512 = vadd.f32 %v486, %v501
    %v513 = vadd.f32 %v487, %v503
    %v514 = vadd.f32 %v488, %v505
    %v515 = vadd.f32 %v489, %v507
    %s516 = sld [smem:[#allocation10 + $0xc]]
    %v517 = vstv %s516
    %v518 = vmul.f32 %v448, %v517
    %v519 = vmul.f32 %v449, %v517
    %v520 = vmul.f32 %v451, %v517
    %v521 = vmul.f32 %v452, %v517
    %v526 = vrot.slane %v518, 2
    %v527 = vrot.slane %v519, 2
    %v528 = vsel %vm255, %v526, %v527
    %v529 = vrot.slane %v520, 2
    %v530 = vrot.slane %v521, 2
    %v531 = vsel %vm255, %v529, %v530
    %v536 = vadd.f32 %v512, %v528
    %v537 = vadd.f32 %v513, %v527
    %v538 = vadd.f32 %v514, %v531
    %v539 = vadd.f32 %v515, %v530
    %s540 = sld [smem:[#allocation10 + $0xd]]
    %v541 = vstv %s540
    %v542 = vmul.f32 %v448, %v541
    %v543 = vmul.f32 %v449, %v541
    %v544 = vmul.f32 %v451, %v541
    %v545 = vmul.f32 %v452, %v541
    %v550 = vrot.slane %v542, 2
    %v551 = vrot.slane %v543, 2
    %v552 = vsel %vm255, %v550, %v551
    %v553 = vrot.slane %v544, 2
    %v554 = vrot.slane %v545, 2
    %v555 = vsel %vm255, %v553, %v554
    %556 = vrot.lane.b32.xlu0 %v552, 126
    %v557 = vpop.permute.xlu0 %556
    %558 = vrot.lane.b32.xlu0 %v551, 126
    %v559 = vpop.permute.xlu0 %558
    %560 = vrot.lane.b32.xlu0 %v555, 126
    %v561 = vpop.permute.xlu0 %560
    %562 = vrot.lane.b32.xlu0 %v554, 126
    %v563 = vpop.permute.xlu0 %562
    %v568 = vadd.f32 %v536, %v557
    %v569 = vadd.f32 %v537, %v559
    %v570 = vadd.f32 %v538, %v561
    %v571 = vadd.f32 %v539, %v563
    %s572 = sld [smem:[#allocation10 + $0xe]]
    %v573 = vstv %s572
    %v574 = vmul.f32 %v448, %v573
    %v575 = vmul.f32 %v449, %v573
    %v576 = vmul.f32 %v451, %v573
    %v577 = vmul.f32 %v452, %v573
    %v582 = vrot.slane %v574, 2
    %v583 = vrot.slane %v575, 2
    %v584 = vsel %vm255, %v582, %v583
    %v585 = vrot.slane %v576, 2
    %v586 = vrot.slane %v577, 2
    %v587 = vsel %vm255, %v585, %v586
    %588 = vrot.lane.b32.xlu0 %v584, 124
    %v589 = vpop.permute.xlu0 %588
    %590 = vrot.lane.b32.xlu0 %v583, 124
    %v591 = vpop.permute.xlu0 %590
    %592 = vrot.lane.b32.xlu0 %v587, 124
    %v593 = vpop.permute.xlu0 %592
    %594 = vrot.lane.b32.xlu0 %v586, 124
    %v595 = vpop.permute.xlu0 %594
    %v600 = vadd.f32 %v568, %v589
    %v601 = vadd.f32 %v569, %v591
    %v602 = vadd.f32 %v570, %v593
    %v603 = vadd.f32 %v571, %v595
    %s604 = sld [smem:[#allocation10 + $0xf]]
    %v605 = vstv %s604
    %v606 = vmul.f32 %v448, %v605
    %v607 = vmul.f32 %v449, %v605
    %v608 = vmul.f32 %v450, %v605
    %v609 = vmul.f32 %v451, %v605
    %v610 = vmul.f32 %v452, %v605
    %v611 = vmul.f32 %v453, %v605
    %v618 = vrot.slane %v606, 4
    %v619 = vrot.slane %v607, 4
    %v620 = vsel %vm348, %v618, %v619
    %v621 = vrot.slane %v608, 4
    %v622 = vsel %vm348, %v619, %v621
    %v623 = vrot.slane %v609, 4
    %v624 = vrot.slane %v610, 4
    %v625 = vsel %vm348, %v623, %v624
    %v626 = vrot.slane %v611, 4
    %v627 = vsel %vm348, %v624, %v626
    %v632 = vadd.f32 %v600, %v620
    %v633 = vadd.f32 %v601, %v622
    %v634 = vadd.f32 %v602, %v625
    %v635 = vadd.f32 %v603, %v627
    %s636 = sld [smem:[#allocation10 + $0x10]]
    %v637 = vstv %s636
    %v638 = vmul.f32 %v448, %v637
    %v639 = vmul.f32 %v449, %v637
    %v640 = vmul.f32 %v450, %v637
    %v641 = vmul.f32 %v451, %v637
    %v642 = vmul.f32 %v452, %v637
    %v643 = vmul.f32 %v453, %v637
    %v650 = vrot.slane %v638, 4
    %v651 = vrot.slane %v639, 4
    %v652 = vsel %vm348, %v650, %v651
    %v653 = vrot.slane %v640, 4
    %v654 = vsel %vm348, %v651, %v653
    %v655 = vrot.slane %v641, 4
    %v656 = vrot.slane %v642, 4
    %v657 = vsel %vm348, %v655, %v656
    %v658 = vrot.slane %v643, 4
    %v659 = vsel %vm348, %v656, %v658
    %660 = vrot.lane.b32.xlu0 %v652, 126
    %v661 = vpop.permute.xlu0 %660
    %662 = vrot.lane.b32.xlu0 %v654, 126
    %v663 = vpop.permute.xlu0 %662
    %664 = vrot.lane.b32.xlu0 %v657, 126
    %v665 = vpop.permute.xlu0 %664
    %666 = vrot.lane.b32.xlu0 %v659, 126
    %v667 = vpop.permute.xlu0 %666
    %v672 = vadd.f32 %v632, %v661
    %v673 = vadd.f32 %v633, %v663
    %v674 = vadd.f32 %v634, %v665
    %v675 = vadd.f32 %v635, %v667
    %s676 = sld [smem:[#allocation10 + $0x11]]
    %v677 = vstv %s676
    %v678 = vmul.f32 %v448, %v677
    %v679 = vmul.f32 %v449, %v677
    %v680 = vmul.f32 %v450, %v677
    %v681 = vmul.f32 %v451, %v677
    %v682 = vmul.f32 %v452, %v677
    %v683 = vmul.f32 %v453, %v677
    %v690 = vrot.slane %v678, 4
    %v691 = vrot.slane %v679, 4
    %v692 = vsel %vm348, %v690, %v691
    %v693 = vrot.slane %v680, 4
    %v694 = vsel %vm348, %v691, %v693
    %v695 = vrot.slane %v681, 4
    %v696 = vrot.slane %v682, 4
    %v697 = vsel %vm348, %v695, %v696
    %v698 = vrot.slane %v683, 4
    %v699 = vsel %vm348, %v696, %v698
    %700 = vrot.lane.b32.xlu0 %v692, 124
    %v701 = vpop.permute.xlu0 %700
    %702 = vrot.lane.b32.xlu0 %v694, 124
    %v703 = vpop.permute.xlu0 %702
    %704 = vrot.lane.b32.xlu0 %v697, 124
    %v705 = vpop.permute.xlu0 %704
    %706 = vrot.lane.b32.xlu0 %v699, 124
    %v707 = vpop.permute.xlu0 %706
    %v712 = vadd.f32 %v672, %v701
    %v713 = vadd.f32 %v673, %v703
    %v714 = vadd.f32 %v674, %v705
    %v715 = vadd.f32 %v675, %v707
    %s716 = scalar_lea.vmem [#allocation2], 48
    %v717 = vld [vmem:[%s716] sm:$0xff]
    %v718 = vld [vmem:[%s716 + $0x8] sm:$0xff]
    %v719 = vld [vmem:[%s716 + $0x10] sm:$0x3]
    %v720 = vld [vmem:[%s716 + $0x48] sm:$0xff]
    %v721 = vld [vmem:[%s716 + $0x50] sm:$0xff]
    %v722 = vld [vmem:[%s716 + $0x58] sm:$0x3]
    %s723 = sld [smem:[#allocation10 + $0x12]]
    %v724 = vstv %s723
    %v725 = vmul.f32 %v717, %v724
    %v726 = vmul.f32 %v718, %v724
    %v727 = vmul.f32 %v720, %v724
    %v728 = vmul.f32 %v721, %v724
    %v729 = vadd.f32 %v712, %v725
    %v730 = vadd.f32 %v713, %v726
    %v731 = vadd.f32 %v714, %v727
    %v732 = vadd.f32 %v715, %v728
    %s733 = sld [smem:[#allocation10 + $0x13]]
    %v734 = vstv %s733
    %v735 = vmul.f32 %v717, %v734
    %v736 = vmul.f32 %v718, %v734
    %v737 = vmul.f32 %v720, %v734
    %v738 = vmul.f32 %v721, %v734
    %743 = vrot.lane.b32.xlu0 %v735, 126
    %v744 = vpop.permute.xlu0 %743
    %745 = vrot.lane.b32.xlu0 %v736, 126
    %v746 = vpop.permute.xlu0 %745
    %747 = vrot.lane.b32.xlu0 %v737, 126
    %v748 = vpop.permute.xlu0 %747
    %749 = vrot.lane.b32.xlu0 %v738, 126
    %v750 = vpop.permute.xlu0 %749
    %v755 = vadd.f32 %v729, %v744
    %v756 = vadd.f32 %v730, %v746
    %v757 = vadd.f32 %v731, %v748
    %v758 = vadd.f32 %v732, %v750
    %s759 = sld [smem:[#allocation10 + $0x14]]
    %v760 = vstv %s759
    %v761 = vmul.f32 %v717, %v760
    %v762 = vmul.f32 %v718, %v760
    %v763 = vmul.f32 %v720, %v760
    %v764 = vmul.f32 %v721, %v760
    %769 = vrot.lane.b32.xlu0 %v761, 124
    %v770 = vpop.permute.xlu0 %769
    %771 = vrot.lane.b32.xlu0 %v762, 124
    %v772 = vpop.permute.xlu0 %771
    %773 = vrot.lane.b32.xlu0 %v763, 124
    %v774 = vpop.permute.xlu0 %773
    %775 = vrot.lane.b32.xlu0 %v764, 124
    %v776 = vpop.permute.xlu0 %775
    %v781 = vadd.f32 %v755, %v770
    %v782 = vadd.f32 %v756, %v772
    %v783 = vadd.f32 %v757, %v774
    %v784 = vadd.f32 %v758, %v776
    %s785 = sld [smem:[#allocation10 + $0x15]]
    %v786 = vstv %s785
    %v787 = vmul.f32 %v717, %v786
    %v788 = vmul.f32 %v718, %v786
    %v789 = vmul.f32 %v720, %v786
    %v790 = vmul.f32 %v721, %v786
    %v795 = vrot.slane %v787, 2
    %v796 = vrot.slane %v788, 2
    %v797 = vsel %vm255, %v795, %v796
    %v798 = vrot.slane %v789, 2
    %v799 = vrot.slane %v790, 2
    %v800 = vsel %vm255, %v798, %v799
    %v805 = vadd.f32 %v781, %v797
    %v806 = vadd.f32 %v782, %v796
    %v807 = vadd.f32 %v783, %v800
    %v808 = vadd.f32 %v784, %v799
    %s809 = sld [smem:[#allocation10 + $0x16]]
    %v810 = vstv %s809
    %v811 = vmul.f32 %v717, %v810
    %v812 = vmul.f32 %v718, %v810
    %v813 = vmul.f32 %v720, %v810
    %v814 = vmul.f32 %v721, %v810
    %v819 = vrot.slane %v811, 2
    %v820 = vrot.slane %v812, 2
    %v821 = vsel %vm255, %v819, %v820
    %v822 = vrot.slane %v813, 2
    %v823 = vrot.slane %v814, 2
    %v824 = vsel %vm255, %v822, %v823
    %825 = vrot.lane.b32.xlu0 %v821, 126
    %v826 = vpop.permute.xlu0 %825
    %827 = vrot.lane.b32.xlu0 %v820, 126
    %v828 = vpop.permute.xlu0 %827
    %829 = vrot.lane.b32.xlu0 %v824, 126
    %v830 = vpop.permute.xlu0 %829
    %831 = vrot.lane.b32.xlu0 %v823, 126
    %v832 = vpop.permute.xlu0 %831
    %v837 = vadd.f32 %v805, %v826
    %v838 = vadd.f32 %v806, %v828
    %v839 = vadd.f32 %v807, %v830
    %v840 = vadd.f32 %v808, %v832
    %s841 = sld [smem:[#allocation10 + $0x17]]
    %v842 = vstv %s841
    %v843 = vmul.f32 %v717, %v842
    %v844 = vmul.f32 %v718, %v842
    %v845 = vmul.f32 %v720, %v842
    %v846 = vmul.f32 %v721, %v842
    %v851 = vrot.slane %v843, 2
    %v852 = vrot.slane %v844, 2
    %v853 = vsel %vm255, %v851, %v852
    %v854 = vrot.slane %v845, 2
    %v855 = vrot.slane %v846, 2
    %v856 = vsel %vm255, %v854, %v855
    %857 = vrot.lane.b32.xlu0 %v853, 124
    %v858 = vpop.permute.xlu0 %857
    %859 = vrot.lane.b32.xlu0 %v852, 124
    %v860 = vpop.permute.xlu0 %859
    %861 = vrot.lane.b32.xlu0 %v856, 124
    %v862 = vpop.permute.xlu0 %861
    %863 = vrot.lane.b32.xlu0 %v855, 124
    %v864 = vpop.permute.xlu0 %863
    %v869 = vadd.f32 %v837, %v858
    %v870 = vadd.f32 %v838, %v860
    %v871 = vadd.f32 %v839, %v862
    %v872 = vadd.f32 %v840, %v864
    %s873 = sld [smem:[#allocation10 + $0x18]]
    %v874 = vstv %s873
    %v875 = vmul.f32 %v717, %v874
    %v876 = vmul.f32 %v718, %v874
    %v877 = vmul.f32 %v719, %v874
    %v878 = vmul.f32 %v720, %v874
    %v879 = vmul.f32 %v721, %v874
    %v880 = vmul.f32 %v722, %v874
    %v887 = vrot.slane %v875, 4
    %v888 = vrot.slane %v876, 4
    %v889 = vsel %vm348, %v887, %v888
    %v890 = vrot.slane %v877, 4
    %v891 = vsel %vm348, %v888, %v890
    %v892 = vrot.slane %v878, 4
    %v893 = vrot.slane %v879, 4
    %v894 = vsel %vm348, %v892, %v893
    %v895 = vrot.slane %v880, 4
    %v896 = vsel %vm348, %v893, %v895
    %v901 = vadd.f32 %v869, %v889
    %v902 = vadd.f32 %v870, %v891
    %v903 = vadd.f32 %v871, %v894
    %v904 = vadd.f32 %v872, %v896
    %s905 = sld [smem:[#allocation10 + $0x19]]
    %v906 = vstv %s905
    %v907 = vmul.f32 %v717, %v906
    %v908 = vmul.f32 %v718, %v906
    %v909 = vmul.f32 %v719, %v906
    %v910 = vmul.f32 %v720, %v906
    %v911 = vmul.f32 %v721, %v906
    %v912 = vmul.f32 %v722, %v906
    %v919 = vrot.slane %v907, 4
    %v920 = vrot.slane %v908, 4
    %v921 = vsel %vm348, %v919, %v920
    %v922 = vrot.slane %v909, 4
    %v923 = vsel %vm348, %v920, %v922
    %v924 = vrot.slane %v910, 4
    %v925 = vrot.slane %v911, 4
    %v926 = vsel %vm348, %v924, %v925
    %v927 = vrot.slane %v912, 4
    %v928 = vsel %vm348, %v925, %v927
    %929 = vrot.lane.b32.xlu0 %v921, 126
    %v930 = vpop.permute.xlu0 %929
    %931 = vrot.lane.b32.xlu0 %v923, 126
    %v932 = vpop.permute.xlu0 %931
    %933 = vrot.lane.b32.xlu0 %v926, 126
    %v934 = vpop.permute.xlu0 %933
    %935 = vrot.lane.b32.xlu0 %v928, 126
    %v936 = vpop.permute.xlu0 %935
    %v941 = vadd.f32 %v901, %v930
    %v942 = vadd.f32 %v902, %v932
    %v943 = vadd.f32 %v903, %v934
    %v944 = vadd.f32 %v904, %v936
    %s945 = sld [smem:[#allocation10 + $0x1a]]
    %v946 = vstv %s945
    %v947 = vmul.f32 %v717, %v946
    %v948 = vmul.f32 %v718, %v946
    %v949 = vmul.f32 %v719, %v946
    %v950 = vmul.f32 %v720, %v946
    %v951 = vmul.f32 %v721, %v946
    %v952 = vmul.f32 %v722, %v946
    %v959 = vrot.slane %v947, 4
    %v960 = vrot.slane %v948, 4
    %v961 = vsel %vm348, %v959, %v960
    %v962 = vrot.slane %v949, 4
    %v963 = vsel %vm348, %v960, %v962
    %v964 = vrot.slane %v950, 4
    %v965 = vrot.slane %v951, 4
    %v966 = vsel %vm348, %v964, %v965
    %v967 = vrot.slane %v952, 4
    %v968 = vsel %vm348, %v965, %v967
    %969 = vrot.lane.b32.xlu0 %v961, 124
    %v970 = vpop.permute.xlu0 %969
    %971 = vrot.lane.b32.xlu0 %v963, 124
    %v972 = vpop.permute.xlu0 %971
    %973 = vrot.lane.b32.xlu0 %v966, 124
    %v974 = vpop.permute.xlu0 %973
    %975 = vrot.lane.b32.xlu0 %v968, 124
    %v976 = vpop.permute.xlu0 %975
    %v981 = vadd.f32 %v941, %v970
    %v982 = vadd.f32 %v942, %v972
    %v983 = vadd.f32 %v943, %v974
    %v984 = vadd.f32 %v944, %v976
    %vm985 = vcmask 113664
    %v986 = vsel %vm985, %v981, 0.0
    %v987 = vsel %vm985, %v983, 0.0
    %v988 = vadd.f32 %v986, %v987
    %vm989 = vcmask 111616
    %v990 = vsel %vm989, %v982, 0.0
    %v991 = vsel %vm989, %v984, 0.0
    %v992 = vadd.f32 %v990, %v991
    %v993 = vmul.f32 %v981, %v981
    %v994 = vmul.f32 %v982, %v982
    %v995 = vmul.f32 %v983, %v983
    %v996 = vmul.f32 %v984, %v984
    %v997 = vsel %vm985, %v993, 0.0
    %v998 = vsel %vm985, %v995, 0.0
    %v999 = vadd.f32 %v997, %v998
    %v1000 = vsel %vm989, %v994, 0.0
    %v1001 = vsel %vm989, %v996, 0.0
    %v1002 = vadd.f32 %v1000, %v1001
    %v1003 = vsel %vm985, %v988, 0.0
    %1004 = vadd.xlane.f32.xlu0 %v1003
    %v1005 = vpop.xlane.xlu0 %1004
    %v1006 = vsel %vm989, %v992, 0.0
    %1007 = vadd.xlane.f32.xlu0 %v1006
    %v1008 = vpop.xlane.xlu0 %1007
    %v1009 = vsel %vm985, %v999, 0.0
    %1010 = vadd.xlane.f32.xlu0 %v1009
    %v1011 = vpop.xlane.xlu0 %1010
    %v1012 = vsel %vm989, %v1002, 0.0
    %1013 = vadd.xlane.f32.xlu0 %v1012
    %v1014 = vpop.xlane.xlu0 %1013
    %v1015 = vsel %vm78, %v1005, 0.0
    %vm1016 = vcmask 5120
    %v1017 = vsel %vm1016, %v1008, 0.0
    %v1018 = vadd.f32 %v1015, %v1017
    %1019 = vadd.xlane.f32.xlu0 %v1018
    %v1020 = vpop.xlane.xlu0 %1019
    %v1021 = vrot.slane %v1020, 4
    %v1022 = vadd.f32 %v1020, %v1021
    %v1023 = vrot.slane %v1022, 2
    %v1024 = vadd.f32 %v1022, %v1023
    %v1025 = vrot.slane %v1024, 1
    %v1026 = vadd.f32 %v1024, %v1025
    %s1027 = vtos %v1026
    %s1028 = smul.f32 %s1027, 0.0025510204
    %v1029 = vsel %vm78, %v1011, 0.0
    %v1030 = vsel %vm1016, %v1014, 0.0
    %v1031 = vadd.f32 %v1029, %v1030
    %1032 = vadd.xlane.f32.xlu0 %v1031
    %v1033 = vpop.xlane.xlu0 %1032
    %v1034 = vrot.slane %v1033, 4
    %v1035 = vadd.f32 %v1033, %v1034
    %v1036 = vrot.slane %v1035, 2
    %v1037 = vadd.f32 %v1035, %v1036
    %v1038 = vrot.slane %v1037, 1
    %v1039 = vadd.f32 %v1037, %v1038
    %s1040 = vtos %v1039
    %s1041 = smul.f32 %s1040, 0.0025510204
    %s1042 = smul.f32 %s1028, %s1028
    %s1043 = ssub.f32 %s1041, %s1042
    %s1044 = smax.f32 %s1043, 0.0
    %s1045 = sld [smem:[#allocation4]]
    %s1046 = smul.f32 %s1045, 2.0
    %s1047 = smul.f32 %s1044, 4.0
    %s1048 = sadd.f32 %s1047, 1e-05
    %v1049 = vstv %s1048
    %v1050 = vrsqrt.pop %v1049
    %s1051 = vtos %v1050
    %s1052 = smul.f32 %s1046, %s1051
    %s1053 = sld [smem:[#allocation5]]
    %s1054 = smul.f32 %s1052, %s1028
    %s1055 = ssub.f32 %s1053, %s1054
    %vm1056 = vcmask 122880
    %1057 = vst.msk [vmem:[#allocation3] sm:$0x1] %vm1056, 0.0
    %1058 = vst.msk [vmem:[#allocation3 + $0x10] sm:$0x1] %vm1056, 0.0
    %1059 = vst.msk [vmem:[#allocation3 + $0xf] sm:$0x1] %vm1056, 0.0
    %1060 = vst.msk [vmem:[#allocation3 + $0x1f] sm:$0x1] %vm1056, 0.0
    %1061 = vst.msk [vmem:[#allocation3 + $0x1] sm:$0xff] %vm78, 0.0
    %1062 = vst.msk [vmem:[#allocation3 + $0x9] sm:$0x3f] %vm1016, 0.0
    %1063 = vst.msk [vmem:[#allocation3 + $0x11] sm:$0xff] %vm78, 0.0
    %1064 = vst.msk [vmem:[#allocation3 + $0x19] sm:$0x3f] %vm1016, 0.0
    %vm1065 = vcmask 130168
    %1066 = vst.msk [vmem:[#allocation3 + $0x1] sm:$0xff] %vm1065, 0.0
    %vm1067 = vcmask 128120
    %1068 = vst.msk [vmem:[#allocation3 + $0x9] sm:$0x3f] %vm1067, 0.0
    %1069 = vst.msk [vmem:[#allocation3 + $0x11] sm:$0xff] %vm1065, 0.0
    %1070 = vst.msk [vmem:[#allocation3 + $0x19] sm:$0x3f] %vm1067, 0.0
    %1075 = vrot.lane.b32.xlu0 %v981, 1
    %v1076 = vpop.permute.xlu0 %1075
    %1077 = vrot.lane.b32.xlu0 %v982, 1
    %v1078 = vpop.permute.xlu0 %1077
    %1079 = vrot.lane.b32.xlu0 %v983, 1
    %v1080 = vpop.permute.xlu0 %1079
    %1081 = vrot.lane.b32.xlu0 %v984, 1
    %v1082 = vpop.permute.xlu0 %1081
    %vm1087 = vcmask 121864
    %1088 = vst.msk [vmem:[#allocation3 + $0x1] sm:$0xff] %vm1087, %v1076
    %vm1089 = vcmask 119816
    %1090 = vst.msk [vmem:[#allocation3 + $0x9] sm:$0x3f] %vm1089, %v1078
    %1091 = vst.msk [vmem:[#allocation3 + $0x11] sm:$0xff] %vm1087, %v1080
    %1092 = vst.msk [vmem:[#allocation3 + $0x19] sm:$0x3f] %vm1089, %v1082
    %v1093 = vld [vmem:[#allocation3] sm:$0xff]
    %v1094 = vld [vmem:[#allocation3 + $0x8] sm:$0xff]
    %v1095 = vld [vmem:[#allocation3 + $0x10] sm:$0xff]
    %v1096 = vld [vmem:[#allocation3 + $0x18] sm:$0xff]
    %s1097 = sld [smem:[#allocation11]]
    %v1098 = vstv %s1097
    %v1099 = vmul.f32 %v1093, %v1098
    %v1100 = vmul.f32 %v1094, %v1098
    %v1101 = vmul.f32 %v1095, %v1098
    %v1102 = vmul.f32 %v1096, %v1098
    %v1103 = vadd.f32 %v1099, 0.0
    %v1104 = vadd.f32 %v1100, 0.0
    %v1105 = vadd.f32 %v1101, 0.0
    %v1106 = vadd.f32 %v1102, 0.0
    %s1107 = sld [smem:[#allocation11 + $0x1]]
    %v1108 = vstv %s1107
    %v1109 = vmul.f32 %v1093, %v1108
    %v1110 = vmul.f32 %v1094, %v1108
    %v1111 = vmul.f32 %v1095, %v1108
    %v1112 = vmul.f32 %v1096, %v1108
    %1117 = vrot.lane.b32.xlu0 %v1109, 127
    %v1118 = vpop.permute.xlu0 %1117
    %1119 = vrot.lane.b32.xlu0 %v1110, 127
    %v1120 = vpop.permute.xlu0 %1119
    %1121 = vrot.lane.b32.xlu0 %v1111, 127
    %v1122 = vpop.permute.xlu0 %1121
    %1123 = vrot.lane.b32.xlu0 %v1112, 127
    %v1124 = vpop.permute.xlu0 %1123
    %v1129 = vadd.f32 %v1103, %v1118
    %v1130 = vadd.f32 %v1104, %v1120
    %v1131 = vadd.f32 %v1105, %v1122
    %v1132 = vadd.f32 %v1106, %v1124
    %s1133 = sld [smem:[#allocation11 + $0x2]]
    %v1134 = vstv %s1133
    %v1135 = vmul.f32 %v1093, %v1134
    %v1136 = vmul.f32 %v1094, %v1134
    %v1137 = vmul.f32 %v1095, %v1134
    %v1138 = vmul.f32 %v1096, %v1134
    %1143 = vrot.lane.b32.xlu0 %v1135, 126
    %v1144 = vpop.permute.xlu0 %1143
    %1145 = vrot.lane.b32.xlu0 %v1136, 126
    %v1146 = vpop.permute.xlu0 %1145
    %1147 = vrot.lane.b32.xlu0 %v1137, 126
    %v1148 = vpop.permute.xlu0 %1147
    %1149 = vrot.lane.b32.xlu0 %v1138, 126
    %v1150 = vpop.permute.xlu0 %1149
    %v1155 = vadd.f32 %v1129, %v1144
    %v1156 = vadd.f32 %v1130, %v1146
    %v1157 = vadd.f32 %v1131, %v1148
    %v1158 = vadd.f32 %v1132, %v1150
    %s1159 = sld [smem:[#allocation11 + $0x3]]
    %v1160 = vstv %s1159
    %v1161 = vmul.f32 %v1093, %v1160
    %v1162 = vmul.f32 %v1094, %v1160
    %v1163 = vmul.f32 %v1095, %v1160
    %v1164 = vmul.f32 %v1096, %v1160
    %vm1169 = vcmask 1046528
    %v1170 = vrot.slane %v1161, 1
    %v1171 = vrot.slane %v1162, 1
    %v1172 = vsel %vm1169, %v1170, %v1171
    %v1173 = vrot.slane %v1163, 1
    %v1174 = vrot.slane %v1164, 1
    %v1175 = vsel %vm1169, %v1173, %v1174
    %v1180 = vadd.f32 %v1155, %v1172
    %v1181 = vadd.f32 %v1156, %v1171
    %v1182 = vadd.f32 %v1157, %v1175
    %v1183 = vadd.f32 %v1158, %v1174
    %s1184 = sld [smem:[#allocation11 + $0x4]]
    %v1185 = vstv %s1184
    %v1186 = vmul.f32 %v1093, %v1185
    %v1187 = vmul.f32 %v1094, %v1185
    %v1188 = vmul.f32 %v1095, %v1185
    %v1189 = vmul.f32 %v1096, %v1185
    %v1194 = vrot.slane %v1186, 1
    %v1195 = vrot.slane %v1187, 1
    %v1196 = vsel %vm1169, %v1194, %v1195
    %v1197 = vrot.slane %v1188, 1
    %v1198 = vrot.slane %v1189, 1
    %v1199 = vsel %vm1169, %v1197, %v1198
    %1200 = vrot.lane.b32.xlu0 %v1196, 127
    %v1201 = vpop.permute.xlu0 %1200
    %1202 = vrot.lane.b32.xlu0 %v1195, 127
    %v1203 = vpop.permute.xlu0 %1202
    %1204 = vrot.lane.b32.xlu0 %v1199, 127
    %v1205 = vpop.permute.xlu0 %1204
    %1206 = vrot.lane.b32.xlu0 %v1198, 127
    %v1207 = vpop.permute.xlu0 %1206
    %v1212 = vadd.f32 %v1180, %v1201
    %v1213 = vadd.f32 %v1181, %v1203
    %v1214 = vadd.f32 %v1182, %v1205
    %v1215 = vadd.f32 %v1183, %v1207
    %s1216 = sld [smem:[#allocation11 + $0x5]]
    %v1217 = vstv %s1216
    %v1218 = vmul.f32 %v1093, %v1217
    %v1219 = vmul.f32 %v1094, %v1217
    %v1220 = vmul.f32 %v1095, %v1217
    %v1221 = vmul.f32 %v1096, %v1217
    %v1226 = vrot.slane %v1218, 1
    %v1227 = vrot.slane %v1219, 1
    %v1228 = vsel %vm1169, %v1226, %v1227
    %v1229 = vrot.slane %v1220, 1
    %v1230 = vrot.slane %v1221, 1
    %v1231 = vsel %vm1169, %v1229, %v1230
    %1232 = vrot.lane.b32.xlu0 %v1228, 126
    %v1233 = vpop.permute.xlu0 %1232
    %1234 = vrot.lane.b32.xlu0 %v1227, 126
    %v1235 = vpop.permute.xlu0 %1234
    %1236 = vrot.lane.b32.xlu0 %v1231, 126
    %v1237 = vpop.permute.xlu0 %1236
    %1238 = vrot.lane.b32.xlu0 %v1230, 126
    %v1239 = vpop.permute.xlu0 %1238
    %v1244 = vadd.f32 %v1212, %v1233
    %v1245 = vadd.f32 %v1213, %v1235
    %v1246 = vadd.f32 %v1214, %v1237
    %v1247 = vadd.f32 %v1215, %v1239
    %s1248 = sld [smem:[#allocation11 + $0x6]]
    %v1249 = vstv %s1248
    %v1250 = vmul.f32 %v1093, %v1249
    %v1251 = vmul.f32 %v1094, %v1249
    %v1252 = vmul.f32 %v1095, %v1249
    %v1253 = vmul.f32 %v1096, %v1249
    %v1258 = vrot.slane %v1250, 2
    %v1259 = vrot.slane %v1251, 2
    %v1260 = vsel %vm255, %v1258, %v1259
    %v1261 = vrot.slane %v1252, 2
    %v1262 = vrot.slane %v1253, 2
    %v1263 = vsel %vm255, %v1261, %v1262
    %v1268 = vadd.f32 %v1244, %v1260
    %v1269 = vadd.f32 %v1245, %v1259
    %v1270 = vadd.f32 %v1246, %v1263
    %v1271 = vadd.f32 %v1247, %v1262
    %s1272 = sld [smem:[#allocation11 + $0x7]]
    %v1273 = vstv %s1272
    %v1274 = vmul.f32 %v1093, %v1273
    %v1275 = vmul.f32 %v1094, %v1273
    %v1276 = vmul.f32 %v1095, %v1273
    %v1277 = vmul.f32 %v1096, %v1273
    %v1282 = vrot.slane %v1274, 2
    %v1283 = vrot.slane %v1275, 2
    %v1284 = vsel %vm255, %v1282, %v1283
    %v1285 = vrot.slane %v1276, 2
    %v1286 = vrot.slane %v1277, 2
    %v1287 = vsel %vm255, %v1285, %v1286
    %1288 = vrot.lane.b32.xlu0 %v1284, 127
    %v1289 = vpop.permute.xlu0 %1288
    %1290 = vrot.lane.b32.xlu0 %v1283, 127
    %v1291 = vpop.permute.xlu0 %1290
    %1292 = vrot.lane.b32.xlu0 %v1287, 127
    %v1293 = vpop.permute.xlu0 %1292
    %1294 = vrot.lane.b32.xlu0 %v1286, 127
    %v1295 = vpop.permute.xlu0 %1294
    %v1300 = vadd.f32 %v1268, %v1289
    %v1301 = vadd.f32 %v1269, %v1291
    %v1302 = vadd.f32 %v1270, %v1293
    %v1303 = vadd.f32 %v1271, %v1295
    %s1304 = sld [smem:[#allocation11 + $0x8]]
    %v1305 = vstv %s1304
    %v1306 = vmul.f32 %v1093, %v1305
    %v1307 = vmul.f32 %v1094, %v1305
    %v1308 = vmul.f32 %v1095, %v1305
    %v1309 = vmul.f32 %v1096, %v1305
    %v1314 = vrot.slane %v1306, 2
    %v1315 = vrot.slane %v1307, 2
    %v1316 = vsel %vm255, %v1314, %v1315
    %v1317 = vrot.slane %v1308, 2
    %v1318 = vrot.slane %v1309, 2
    %v1319 = vsel %vm255, %v1317, %v1318
    %1320 = vrot.lane.b32.xlu0 %v1316, 126
    %v1321 = vpop.permute.xlu0 %1320
    %1322 = vrot.lane.b32.xlu0 %v1315, 126
    %v1323 = vpop.permute.xlu0 %1322
    %1324 = vrot.lane.b32.xlu0 %v1319, 126
    %v1325 = vpop.permute.xlu0 %1324
    %1326 = vrot.lane.b32.xlu0 %v1318, 126
    %v1327 = vpop.permute.xlu0 %1326
    %v1332 = vadd.f32 %v1300, %v1321
    %v1333 = vadd.f32 %v1301, %v1323
    %v1334 = vadd.f32 %v1302, %v1325
    %v1335 = vadd.f32 %v1303, %v1327
    %v1336 = vlaneseq
    %v1337 = vshrl.u32 %v1336, 7
    %v1338 = vadd.s32 %v1337, 8
    %v1339 = vlaneseq
    %v1340 = vand.u32 %v1339, 127
    %vm1341 = vcmp.ge.s32.totalorder %v1337, 1
    %vm1342 = vcmp.ge.s32.totalorder %v1338, 1
    %vm1343 = vcmp.le.s32.totalorder %v1337, 14
    %vm1344 = vcmp.le.s32.totalorder %v1338, 14
    %vm1345 = vmand %vm1341, %vm1343
    %vm1346 = vmand %vm1342, %vm1344
    %vm1347 = vcmp.ge.s32.totalorder %v1340, 1
    %vm1348 = vcmp.le.s32.totalorder %v1340, 14
    %vm1349 = vmand %vm1347, %vm1348
    %vm1350 = vmand %vm1345, %vm1349
    %vm1351 = vmand %vm1346, %vm1349
    %v1352 = vsel %vm1350, %v1098, 0.0
    %v1353 = vsel %vm1351, %v1098, 0.0
    %v1354 = vadd.f32 %v1352, 0.0
    %v1355 = vadd.f32 %v1353, 0.0
    %v1356 = vadd.s32 %v1340, 1
    %vm1357 = vcmp.ge.s32.totalorder %v1356, 1
    %vm1358 = vcmp.le.s32.totalorder %v1356, 14
    %vm1359 = vmand %vm1357, %vm1358
    %vm1360 = vmand %vm1345, %vm1359
    %vm1361 = vmand %vm1346, %vm1359
    %v1362 = vsel %vm1360, %v1108, 0.0
    %v1363 = vsel %vm1361, %v1108, 0.0
    %v1364 = vadd.f32 %v1354, %v1362
    %v1365 = vadd.f32 %v1355, %v1363
    %v1366 = vadd.s32 %v1340, 2
    %vm1367 = vcmp.ge.s32.totalorder %v1366, 1
    %vm1368 = vcmp.le.s32.totalorder %v1366, 14
    %vm1369 = vmand %vm1367, %vm1368
    %vm1370 = vmand %vm1345, %vm1369
    %vm1371 = vmand %vm1346, %vm1369
    %v1372 = vsel %vm1370, %v1134, 0.0
    %v1373 = vsel %vm1371, %v1134, 0.0
    %v1374 = vadd.f32 %v1364, %v1372
    %v1375 = vadd.f32 %v1365, %v1373
    %v1376 = vadd.s32 %v1337, 1
    %v1377 = vadd.s32 %v1338, 1
    %vm1378 = vcmp.ge.s32.totalorder %v1376, 1
    %vm1379 = vcmp.ge.s32.totalorder %v1377, 1
    %vm1380 = vcmp.le.s32.totalorder %v1376, 14
    %vm1381 = vcmp.le.s32.totalorder %v1377, 14
    %vm1382 = vmand %vm1378, %vm1380
    %vm1383 = vmand %vm1379, %vm1381
    %vm1384 = vmand %vm1382, %vm1349
    %vm1385 = vmand %vm1383, %vm1349
    %v1386 = vsel %vm1384, %v1160, 0.0
    %v1387 = vsel %vm1385, %v1160, 0.0
    %v1388 = vadd.f32 %v1374, %v1386
    %v1389 = vadd.f32 %v1375, %v1387
    %vm1390 = vmand %vm1382, %vm1359
    %vm1391 = vmand %vm1383, %vm1359
    %v1392 = vsel %vm1390, %v1185, 0.0
    %v1393 = vsel %vm1391, %v1185, 0.0
    %v1394 = vadd.f32 %v1388, %v1392
    %v1395 = vadd.f32 %v1389, %v1393
    %vm1396 = vmand %vm1382, %vm1369
    %vm1397 = vmand %vm1383, %vm1369
    %v1398 = vsel %vm1396, %v1217, 0.0
    %v1399 = vsel %vm1397, %v1217, 0.0
    %v1400 = vadd.f32 %v1394, %v1398
    %v1401 = vadd.f32 %v1395, %v1399
    %v1402 = vadd.s32 %v1337, 2
    %v1403 = vadd.s32 %v1338, 2
    %vm1404 = vcmp.ge.s32.totalorder %v1402, 1
    %vm1405 = vcmp.ge.s32.totalorder %v1403, 1
    %vm1406 = vcmp.le.s32.totalorder %v1402, 14
    %vm1407 = vcmp.le.s32.totalorder %v1403, 14
    %vm1408 = vmand %vm1404, %vm1406
    %vm1409 = vmand %vm1405, %vm1407
    %vm1410 = vmand %vm1408, %vm1349
    %vm1411 = vmand %vm1409, %vm1349
    %v1412 = vsel %vm1410, %v1249, 0.0
    %v1413 = vsel %vm1411, %v1249, 0.0
    %v1414 = vadd.f32 %v1400, %v1412
    %v1415 = vadd.f32 %v1401, %v1413
    %vm1416 = vmand %vm1408, %vm1359
    %vm1417 = vmand %vm1409, %vm1359
    %v1418 = vsel %vm1416, %v1273, 0.0
    %v1419 = vsel %vm1417, %v1273, 0.0
    %v1420 = vadd.f32 %v1414, %v1418
    %v1421 = vadd.f32 %v1415, %v1419
    %vm1422 = vmand %vm1408, %vm1369
    %vm1423 = vmand %vm1409, %vm1369
    %v1424 = vsel %vm1422, %v1305, 0.0
    %v1425 = vsel %vm1423, %v1305, 0.0
    %v1426 = vadd.f32 %v1420, %v1424
    %v1427 = vadd.f32 %v1421, %v1425
    %v1428 = vstv %s1055
    %v1429 = vmul.f32 %v1428, %v1426
    %v1430 = vmul.f32 %v1428, %v1427
    %s1431 = sld [smem:[#allocation6]]
    %v1432 = vstv %s1431
    %v1433 = vadd.f32 %v1429, %v1432
    %v1434 = vadd.f32 %v1430, %v1432
    %v1435 = vstv %s1052
    %v1436 = vmul.f32 %v1435, %v1332
    %v1437 = vmul.f32 %v1435, %v1333
    %v1438 = vmul.f32 %v1435, %v1334
    %v1439 = vmul.f32 %v1435, %v1335
    %v1440 = vadd.f32 %v1436, %v1433
    %v1441 = vadd.f32 %v1437, %v1434
    %v1442 = vadd.f32 %v1438, %v1433
    %v1443 = vadd.f32 %v1439, %v1434
    %1444 = vst.msk [vmem:[%s6] sm:$0xff] %vm985, %v1440
    %1445 = vst.msk [vmem:[%s6 + $0x8] sm:$0x3f] %vm989, %v1441
    %1446 = vst.msk [vmem:[%s6 + $0x10] sm:$0xff] %vm985, %v1442
    %1447 = vst.msk [vmem:[%s6 + $0x18] sm:$0x3f] %vm989, %v1443
    // Predicated region
    $region38: #{fwd.1} parent=1 // pred_check
      _
    $region39: #{fwd.1} parent=1 // pred_check_branch
      %1449 = sbr.rel (0) target = $region41
    $region40: #{fwd.1} parent=1 // pred_region
      _
    $region41: #{fwd.1} parent=1 // pred_fallthru
      _
    // Predicated region
    $region42: #{fwd.1} parent=1 // pred_check
      _
    $region43: #{fwd.1} parent=1 // pred_check_branch
      %1451 = sbr.rel (0) target = $region45
    $region44: #{fwd.1} parent=1 // pred_region
      _
    $region45: #{fwd.1} parent=1 // pred_fallthru
      _
    %1452 = vsyncpa [#allocation8], 1
    %1453 = vsyncpa [#allocation9], 1
    %1454 = vsyncpa [#allocation12], 1

</llo_original>
